<compile_context>
chip_gen: v7x
topology: tpu7x:2x2x1
jax: 0.10.0
libtpu: 0.0.40
codegen_flags: <defaults>
</compile_context>

<pallas_src>
import functools

import jax
import jax.numpy as jnp
from jax.experimental import pallas as pl
from jax.experimental.pallas import tpu as pltpu


def _round_up(x, n):
    return ((x + n - 1) // n) * n


def _tpu_generation():
    """Best-effort TPU generation from device_kind; None if unknown."""
    try:
        dev = jax.devices()[0]
        if dev.platform != "tpu":
            return None
        kind = dev.device_kind.lower()
    except Exception:
        return None
    for tag, gen in (("v7", 7), ("7x", 7), ("v6", 6), ("v5", 5),
                     ("v4", 4), ("v3", 3), ("v2", 2)):
        if tag in kind:
            return gen
    return None


def _select_tiles(m_pad, cin_pad, cout_pad, b, esize_in, budget):
    """Pick (TM, tile_cin): largest lane-dense M tile, then largest Cin tile,
    such that the double-buffered per-step VMEM footprint fits the budget."""
    tm_cands = [t for t in range(min(m_pad, 2048), 0, -128) if m_pad % t == 0]
    tc_cands = [c for c in range(cin_pad, 0, -8) if cin_pad % c == 0]
    for tm in tm_cands:
        for tc in tc_cands:
            x_b = 2 * b * tc * tm * esize_in          # (2, B, tc, tm) input tile
            w_b = 2 * tc * cout_pad * tm * esize_in   # (2, tc, Cout, tm) weight tile
            o_b = 2 * b * cout_pad * tm * 4           # (2, B, Cout, tm) f32 output tile
            if 2 * (x_b + w_b + o_b) <= budget:       # x2: double buffering
                return tm, tc
    return tm_cands[-1], tc_cands[-1]


def _compl_mul_kernel(x_ref, w_ref, o_ref):
    """One (corner, M-tile, Cin-tile) grid step of the complex contraction.

    x_ref: (2, B, TCIN, TM)      re/im on axis 0, compute dtype (f32 or bf16)
    w_ref: (2, TCIN, COUT, TM)   compute dtype
    o_ref: (2, B, COUT, TM) f32  resident accumulator across the Cin grid axis
    """
    k = pl.program_id(2)
    _, b, tcin, tm = x_ref.shape
    cout = w_ref.shape[2]

    # Lane chunk so the two (COUT, CH) f32 accumulators stay ~vreg-resident
    # (<= ~16 vregs total) while the Cin tile is the innermost loop.
    ch = next((c for c in range(tm, 0, -128)
               if tm % c == 0 and cout * c <= 8192), 128)

    first = k == 0
    for bi in range(b):                       # static unroll: full LLO visibility
        for m0 in range(0, tm, ch):
            sl = slice(m0, m0 + ch)
            acc_re = jnp.zeros((cout, ch), jnp.float32)
            acc_im = jnp.zeros((cout, ch), jnp.float32)
            for i in range(tcin):             # Cin reduction, innermost
                xr = x_ref[0, bi, i:i + 1, sl]      # (1, CH) sublane-broadcast row
                xi = x_ref[1, bi, i:i + 1, sl]
                wr = w_ref[0, i, :, sl]             # (COUT, CH)
                wi = w_ref[1, i, :, sl]
                # (a+ib)(c+id): products in the input dtype (bf16 on v6e/v7x),
                # accumulation promoted to f32.
                acc_re = acc_re + (xr * wr - xi * wi)
                acc_im = acc_im + (xr * wi + xi * wr)

            @pl.when(first)
            def _():
                o_ref[0, bi, :, sl] = acc_re
                o_ref[1, bi, :, sl] = acc_im

            @pl.when(jnp.logical_not(first))
            def _():
                o_ref[0, bi, :, sl] = o_ref[0, bi, :, sl] + acc_re
                o_ref[1, bi, :, sl] = o_ref[1, bi, :, sl] + acc_im


def compl_mul_corners(x_ri, w_ri, *, vmem_limit_bytes):
    """x_ri: (4, 2, B, Cin_pad, M_pad), w_ri: (4, 2, Cin_pad, Cout_pad, M_pad)
       -> (4, 2, B, Cout_pad, M_pad) float32."""
    c4, _, b, cin_pad, m_pad = x_ri.shape
    cout_pad = w_ri.shape[3]
    esize = jnp.dtype(x_ri.dtype).itemsize

    tm, tcin = _select_tiles(m_pad, cin_pad, cout_pad, b, esize,
                             budget=int(0.7 * vmem_limit_bytes))
    n_m = m_pad // tm
    n_k = cin_pad // tcin

    x_spec = pl.BlockSpec((None, 2, b, tcin, tm), lambda c, m, k: (c, 0, 0, k, m))
    # TODO(synk): if a profile shows exposed weight DMA on v5e, add
    # pipeline_mode=pl.Buffered(3) to w_spec (keep default depth 2 on v7x).
    w_spec = pl.BlockSpec((None, 2, tcin, cout_pad, tm), lambda c, m, k: (c, 0, k, 0, m))
    o_spec = pl.BlockSpec((None, 2, b, cout_pad, tm), lambda c, m, k: (c, 0, 0, 0, m))

    cost = pl.CostEstimate(
        flops=8 * c4 * b * cin_pad * cout_pad * m_pad,
        transcendentals=0,
        bytes_accessed=(x_ri.size + w_ri.size) * esize
        + c4 * 2 * b * cout_pad * m_pad * 4,
    )

    return pl.pallas_call(
        _compl_mul_kernel,
        out_shape=jax.ShapeDtypeStruct((c4, 2, b, cout_pad, m_pad), jnp.float32),
        grid_spec=pltpu.PrefetchScalarGridSpec(
            num_scalar_prefetch=0,
            grid=(c4, n_m, n_k),              # Cin reduction axis last
            in_specs=[x_spec, w_spec],
            out_specs=o_spec,
        ),
        compiler_params=pltpu.CompilerParams(
            dimension_semantics=("parallel", "parallel", "arbitrary"),
            vmem_limit_bytes=vmem_limit_bytes,
        ),
        cost_estimate=cost,
    )(x_ri, w_ri)


def _spectral_conv3d_forward(x, w_packed, *, modes, out_channels, cin_pad,
                             m_pad, compute_dtype, vmem_limit):
    m1, m2, m3 = modes
    B, Cin, D1, D2, D3 = x.shape
    M = m1 * m2 * m3

    # TODO(synk): rfftn / irfftn have no Pallas equivalent; kept as XLA FFT ops.
    x_ft = jnp.fft.rfftn(x, axes=(-3, -2, -1))         # (B, Cin, D1, D2, D3//2+1)

    # 4 retained-mode corner blocks; produce (4, 2, B, Cin, M) directly (no transpose).
    corners = [
        x_ft[:, :, :m1, :m2, :m3],
        x_ft[:, :, D1 - m1:, :m2, :m3],
        x_ft[:, :, :m1, D2 - m2:, :m3],
        x_ft[:, :, D1 - m1:, D2 - m2:, :m3],
    ]
    xc = jnp.stack(corners, axis=0).reshape(4, B, Cin, M)                # complex64
    x_ri = jnp.stack([xc.real, xc.imag], axis=1).astype(compute_dtype)   # (4,2,B,Cin,M)
    x_ri = jnp.pad(x_ri, ((0, 0), (0, 0), (0, 0),
                          (0, cin_pad - Cin), (0, m_pad - M)))

    o_ri = compl_mul_corners(x_ri, w_packed, vmem_limit_bytes=vmem_limit)
    o_re = o_ri[:, 0, :, :out_channels, :M]
    o_im = o_ri[:, 1, :, :out_channels, :M]
    o_c = jax.lax.complex(o_re, o_im).reshape(4, B, out_channels, m1, m2, m3)

    out_ft = jnp.zeros((B, out_channels, D1, D2, D3 // 2 + 1), jnp.complex64)
    out_ft = out_ft.at[:, :, :m1, :m2, :m3].set(o_c[0])
    out_ft = out_ft.at[:, :, D1 - m1:, :m2, :m3].set(o_c[1])
    out_ft = out_ft.at[:, :, :m1, D2 - m2:, :m3].set(o_c[2])
    out_ft = out_ft.at[:, :, D1 - m1:, D2 - m2:, :m3].set(o_c[3])

    return jnp.fft.irfftn(out_ft, s=(D1, D2, D3), axes=(-3, -2, -1))


class SpectralConv3d:
    def __init__(self, in_channels, out_channels, modes1, modes2, modes3, key):
        self.in_channels = in_channels
        self.out_channels = out_channels
        self.modes1, self.modes2, self.modes3 = modes1, modes2, modes3

        gen = _tpu_generation()
        # bf16 inputs / f32 accumulation on bf16-native-VALU chips (v6e, v7x);
        # f32 compute on v5e / unknown hardware.
        self.compute_dtype = jnp.bfloat16 if gen in (6, 7) else jnp.float32
        if gen == 7:
            self.vmem_limit = 48 * 1024 * 1024      # v7x: 64 MiB physical VMEM
        elif gen in (5, 6):
            self.vmem_limit = 100 * 1024 * 1024     # 128 MiB physical VMEM
        else:
            self.vmem_limit = 64 * 1024 * 1024

        scale = 1.0 / (in_channels * out_channels)
        shape = (in_channels, out_channels, modes1, modes2, modes3)
        keys = jax.random.split(key, 8)
        # torch.rand(..., dtype=cfloat): real & imag parts ~ U[0, 1)
        self.weights = []
        for i in range(4):
            wr = scale * jax.random.uniform(keys[2 * i], shape, dtype=jnp.float32)
            wi = scale * jax.random.uniform(keys[2 * i + 1], shape, dtype=jnp.float32)
            self.weights.append((wr, wi))

        M = modes1 * modes2 * modes3
        self.M = M
        self.M_pad = _round_up(M, 128)               # lane-dense flattened modes
        self.Cin_pad = _round_up(in_channels, 8)     # sublane occupancy
        self.Cout_pad = _round_up(out_channels, 8)

        wr_all = jnp.stack([w[0].reshape(in_channels, out_channels, M)
                            for w in self.weights], 0)
        wi_all = jnp.stack([w[1].reshape(in_channels, out_channels, M)
                            for w in self.weights], 0)
        w_ri = jnp.stack([wr_all, wi_all], axis=1)   # (4, 2, Cin, Cout, M)
        w_ri = jnp.pad(w_ri, ((0, 0), (0, 0),
                              (0, self.Cin_pad - in_channels),
                              (0, self.Cout_pad - out_channels),
                              (0, self.M_pad - M)))
        self.w_packed = w_ri.astype(self.compute_dtype)

        self._forward = jax.jit(functools.partial(
            _spectral_conv3d_forward,
            modes=(modes1, modes2, modes3),
            out_channels=out_channels,
            cin_pad=self.Cin_pad,
            m_pad=self.M_pad,
            compute_dtype=self.compute_dtype,
            vmem_limit=self.vmem_limit,
        ))

    def __call__(self, x):
        return self._forward(x, self.w_packed)


if __name__ == "__main__":
    B, Cin, Cout = 2, 4, 4
    D1 = D2 = D3 = 16
    m1 = m2 = m3 = 4

    key = jax.random.PRNGKey(0)
    k_x, k_w = jax.random.split(key)

    layer = SpectralConv3d(Cin, Cout, m1, m2, m3, k_w)
    x = jax.random.normal(k_x, (B, Cin, D1, D2, D3), dtype=jnp.float32)

    y = jax.block_until_ready(layer(x))
    assert y.shape == (B, Cout, D1, D2, D3)

    # Pure-JAX reference for the whole forward (exact module semantics).
    def ref_forward(x):
        x_ft = jnp.fft.rfftn(x, axes=(-3, -2, -1))
        out_ft = jnp.zeros((B, Cout, D1, D2, D3 // 2 + 1), dtype=jnp.complex64)
        ws = [(wr + 1j * wi).astype(jnp.complex64) for wr, wi in layer.weights]
        sls = [
            (slice(None), slice(None), slice(0, m1), slice(0, m2), slice(0, m3)),
            (slice(None), slice(None), slice(D1 - m1, D1), slice(0, m2), slice(0, m3)),
            (slice(None), slice(None), slice(0, m1), slice(D2 - m2, D2), slice(0, m3)),
            (slice(None), slice(None), slice(D1 - m1, D1), slice(D2 - m2, D2), slice(0, m3)),
        ]
        for s, w in zip(sls, ws):
            out_ft = out_ft.at[s].set(jnp.einsum("bixyz,ioxyz->boxyz", x_ft[s], w))
        return jnp.fft.irfftn(out_ft, s=(D1, D2, D3), axes=(-3, -2, -1))

    y_ref = jax.block_until_ready(ref_forward(x))

    # Tight tolerance for the f32 path; relaxed when bf16 inputs are used
    # (accumulation stays f32, so only input-quantization error remains).
    scale = float(jnp.max(jnp.abs(y_ref))) + 1e-12
    rel = 5e-2 if layer.compute_dtype == jnp.bfloat16 else 1e-4
    err = float(jnp.max(jnp.abs(y - y_ref)))
    assert err <= rel * scale, f"max abs err {err} vs tol {rel * scale}"
    print("KERNEL_OK")
</pallas_src>

<mosaic_0001>
module attributes {stable_mosaic.version = 11 : i64} {
  func.func @_compl_mul_kernel(%arg0: i32, %arg1: i32, %arg2: i32, %arg3: memref<1x2x2x8x128xf32, #tpu.memory_space<vmem>>, %arg4: memref<1x2x8x8x128xf32, #tpu.memory_space<vmem>>, %arg5: memref<1x2x2x8x128xf32, #tpu.memory_space<vmem>>) attributes {dimension_semantics = [#tpu.dimension_semantics<parallel>, #tpu.dimension_semantics<parallel>, #tpu.dimension_semantics<arbitrary>], iteration_bounds = array<i64: 4, 1, 1>, scalar_prefetch = 0 : i64, scratch_operands = 0 : i64, tpu.core_type = #tpu.core_type<tc>, window_params = [{transform_indices = @transform_0, window_bounds = array<i64: 1, 2, 2, 8, 128>}, {transform_indices = @transform_1, window_bounds = array<i64: 1, 2, 8, 8, 128>}, {transform_indices = @transform_2, window_bounds = array<i64: 1, 2, 2, 8, 128>}]} {
    %c0_i32 = arith.constant 0 : i32
    %0 = arith.cmpi eq, %arg2, %c0_i32 : i32
    %cst = arith.constant 0.000000e+00 : f32
    %1 = vector.broadcast %cst : f32 to vector<8x128xf32>
    %cst_0 = arith.constant 0.000000e+00 : f32
    %2 = vector.broadcast %cst_0 : f32 to vector<8x128xf32>
    %c0 = arith.constant 0 : index
    %c0_1 = arith.constant 0 : index
    %c0_2 = arith.constant 0 : index
    %c0_3 = arith.constant 0 : index
    %c0_4 = arith.constant 0 : index
    %3 = vector.load %arg3[%c0, %c0_1, %c0_2, %c0_3, %c0_4] : memref<1x2x2x8x128xf32, #tpu.memory_space<vmem>>, vector<1x1x1x1x128xf32>
    %4 = vector.shape_cast %3 : vector<1x1x1x1x128xf32> to vector<1x128xf32>
    %c0_5 = arith.constant 0 : index
    %c1 = arith.constant 1 : index
    %c0_6 = arith.constant 0 : index
    %c0_7 = arith.constant 0 : index
    %c0_8 = arith.constant 0 : index
    %5 = vector.load %arg3[%c0_5, %c1, %c0_6, %c0_7, %c0_8] : memref<1x2x2x8x128xf32, #tpu.memory_space<vmem>>, vector<1x1x1x1x128xf32>
    %6 = vector.shape_cast %5 : vector<1x1x1x1x128xf32> to vector<1x128xf32>
    %c0_9 = arith.constant 0 : index
    %c0_10 = arith.constant 0 : index
    %c0_11 = arith.constant 0 : index
    %c0_12 = arith.constant 0 : index
    %c0_13 = arith.constant 0 : index
    %7 = vector.load %arg4[%c0_9, %c0_10, %c0_11, %c0_12, %c0_13] : memref<1x2x8x8x128xf32, #tpu.memory_space<vmem>>, vector<1x1x1x8x128xf32>
    %8 = vector.shape_cast %7 : vector<1x1x1x8x128xf32> to vector<8x128xf32>
    %c0_14 = arith.constant 0 : index
    %c1_15 = arith.constant 1 : index
    %c0_16 = arith.constant 0 : index
    %c0_17 = arith.constant 0 : index
    %c0_18 = arith.constant 0 : index
    %9 = vector.load %arg4[%c0_14, %c1_15, %c0_16, %c0_17, %c0_18] : memref<1x2x8x8x128xf32, #tpu.memory_space<vmem>>, vector<1x1x1x8x128xf32>
    %10 = vector.shape_cast %9 : vector<1x1x1x8x128xf32> to vector<8x128xf32>
    %11 = vector.broadcast %4 : vector<1x128xf32> to vector<8x128xf32>
    %12 = arith.mulf %11, %8 : vector<8x128xf32>
    %13 = vector.broadcast %6 : vector<1x128xf32> to vector<8x128xf32>
    %14 = arith.mulf %13, %10 : vector<8x128xf32>
    %15 = arith.subf %12, %14 : vector<8x128xf32>
    %16 = arith.addf %1, %15 : vector<8x128xf32>
    %17 = vector.broadcast %4 : vector<1x128xf32> to vector<8x128xf32>
    %18 = arith.mulf %17, %10 : vector<8x128xf32>
    %19 = vector.broadcast %6 : vector<1x128xf32> to vector<8x128xf32>
    %20 = arith.mulf %19, %8 : vector<8x128xf32>
    %21 = arith.addf %18, %20 : vector<8x128xf32>
    %22 = arith.addf %2, %21 : vector<8x128xf32>
    %c0_19 = arith.constant 0 : index
    %c0_20 = arith.constant 0 : index
    %c0_21 = arith.constant 0 : index
    %c1_22 = arith.constant 1 : index
    %c0_23 = arith.constant 0 : index
    %23 = vector.load %arg3[%c0_19, %c0_20, %c0_21, %c1_22, %c0_23] : memref<1x2x2x8x128xf32, #tpu.memory_space<vmem>>, vector<1x1x1x1x128xf32>
    %24 = vector.shape_cast %23 : vector<1x1x1x1x128xf32> to vector<1x128xf32>
    %c0_24 = arith.constant 0 : index
    %c1_25 = arith.constant 1 : index
    %c0_26 = arith.constant 0 : index
    %c1_27 = arith.constant 1 : index
    %c0_28 = arith.constant 0 : index
    %25 = vector.load %arg3[%c0_24, %c1_25, %c0_26, %c1_27, %c0_28] : memref<1x2x2x8x128xf32, #tpu.memory_space<vmem>>, vector<1x1x1x1x128xf32>
    %26 = vector.shape_cast %25 : vector<1x1x1x1x128xf32> to vector<1x128xf32>
    %c0_29 = arith.constant 0 : index
    %c0_30 = arith.constant 0 : index
    %c1_31 = arith.constant 1 : index
    %c0_32 = arith.constant 0 : index
    %c0_33 = arith.constant 0 : index
    %27 = vector.load %arg4[%c0_29, %c0_30, %c1_31, %c0_32, %c0_33] : memref<1x2x8x8x128xf32, #tpu.memory_space<vmem>>, vector<1x1x1x8x128xf32>
    %28 = vector.shape_cast %27 : vector<1x1x1x8x128xf32> to vector<8x128xf32>
    %c0_34 = arith.constant 0 : index
    %c1_35 = arith.constant 1 : index
    %c1_36 = arith.constant 1 : index
    %c0_37 = arith.constant 0 : index
    %c0_38 = arith.constant 0 : index
    %29 = vector.load %arg4[%c0_34, %c1_35, %c1_36, %c0_37, %c0_38] : memref<1x2x8x8x128xf32, #tpu.memory_space<vmem>>, vector<1x1x1x8x128xf32>
    %30 = vector.shape_cast %29 : vector<1x1x1x8x128xf32> to vector<8x128xf32>
    %31 = vector.broadcast %24 : vector<1x128xf32> to vector<8x128xf32>
    %32 = arith.mulf %31, %28 : vector<8x128xf32>
    %33 = vector.broadcast %26 : vector<1x128xf32> to vector<8x128xf32>
    %34 = arith.mulf %33, %30 : vector<8x128xf32>
    %35 = arith.subf %32, %34 : vector<8x128xf32>
    %36 = arith.addf %16, %35 : vector<8x128xf32>
    %37 = vector.broadcast %24 : vector<1x128xf32> to vector<8x128xf32>
    %38 = arith.mulf %37, %30 : vector<8x128xf32>
    %39 = vector.broadcast %26 : vector<1x128xf32> to vector<8x128xf32>
    %40 = arith.mulf %39, %28 : vector<8x128xf32>
    %41 = arith.addf %38, %40 : vector<8x128xf32>
    %42 = arith.addf %22, %41 : vector<8x128xf32>
    %c0_39 = arith.constant 0 : index
    %c0_40 = arith.constant 0 : index
    %c0_41 = arith.constant 0 : index
    %c2 = arith.constant 2 : index
    %c0_42 = arith.constant 0 : index
    %43 = vector.load %arg3[%c0_39, %c0_40, %c0_41, %c2, %c0_42] : memref<1x2x2x8x128xf32, #tpu.memory_space<vmem>>, vector<1x1x1x1x128xf32>
    %44 = vector.shape_cast %43 : vector<1x1x1x1x128xf32> to vector<1x128xf32>
    %c0_43 = arith.constant 0 : index
    %c1_44 = arith.constant 1 : index
    %c0_45 = arith.constant 0 : index
    %c2_46 = arith.constant 2 : index
    %c0_47 = arith.constant 0 : index
    %45 = vector.load %arg3[%c0_43, %c1_44, %c0_45, %c2_46, %c0_47] : memref<1x2x2x8x128xf32, #tpu.memory_space<vmem>>, vector<1x1x1x1x128xf32>
    %46 = vector.shape_cast %45 : vector<1x1x1x1x128xf32> to vector<1x128xf32>
    %c0_48 = arith.constant 0 : index
    %c0_49 = arith.constant 0 : index
    %c2_50 = arith.constant 2 : index
    %c0_51 = arith.constant 0 : index
    %c0_52 = arith.constant 0 : index
    %47 = vector.load %arg4[%c0_48, %c0_49, %c2_50, %c0_51, %c0_52] : memref<1x2x8x8x128xf32, #tpu.memory_space<vmem>>, vector<1x1x1x8x128xf32>
    %48 = vector.shape_cast %47 : vector<1x1x1x8x128xf32> to vector<8x128xf32>
    %c0_53 = arith.constant 0 : index
    %c1_54 = arith.constant 1 : index
    %c2_55 = arith.constant 2 : index
    %c0_56 = arith.constant 0 : index
    %c0_57 = arith.constant 0 : index
    %49 = vector.load %arg4[%c0_53, %c1_54, %c2_55, %c0_56, %c0_57] : memref<1x2x8x8x128xf32, #tpu.memory_space<vmem>>, vector<1x1x1x8x128xf32>
    %50 = vector.shape_cast %49 : vector<1x1x1x8x128xf32> to vector<8x128xf32>
    %51 = vector.broadcast %44 : vector<1x128xf32> to vector<8x128xf32>
    %52 = arith.mulf %51, %48 : vector<8x128xf32>
    %53 = vector.broadcast %46 : vector<1x128xf32> to vector<8x128xf32>
    %54 = arith.mulf %53, %50 : vector<8x128xf32>
    %55 = arith.subf %52, %54 : vector<8x128xf32>
    %56 = arith.addf %36, %55 : vector<8x128xf32>
    %57 = vector.broadcast %44 : vector<1x128xf32> to vector<8x128xf32>
    %58 = arith.mulf %57, %50 : vector<8x128xf32>
    %59 = vector.broadcast %46 : vector<1x128xf32> to vector<8x128xf32>
    %60 = arith.mulf %59, %48 : vector<8x128xf32>
    %61 = arith.addf %58, %60 : vector<8x128xf32>
    %62 = arith.addf %42, %61 : vector<8x128xf32>
    %c0_58 = arith.constant 0 : index
    %c0_59 = arith.constant 0 : index
    %c0_60 = arith.constant 0 : index
    %c3 = arith.constant 3 : index
    %c0_61 = arith.constant 0 : index
    %63 = vector.load %arg3[%c0_58, %c0_59, %c0_60, %c3, %c0_61] : memref<1x2x2x8x128xf32, #tpu.memory_space<vmem>>, vector<1x1x1x1x128xf32>
    %64 = vector.shape_cast %63 : vector<1x1x1x1x128xf32> to vector<1x128xf32>
    %c0_62 = arith.constant 0 : index
    %c1_63 = arith.constant 1 : index
    %c0_64 = arith.constant 0 : index
    %c3_65 = arith.constant 3 : index
    %c0_66 = arith.constant 0 : index
    %65 = vector.load %arg3[%c0_62, %c1_63, %c0_64, %c3_65, %c0_66] : memref<1x2x2x8x128xf32, #tpu.memory_space<vmem>>, vector<1x1x1x1x128xf32>
    %66 = vector.shape_cast %65 : vector<1x1x1x1x128xf32> to vector<1x128xf32>
    %c0_67 = arith.constant 0 : index
    %c0_68 = arith.constant 0 : index
    %c3_69 = arith.constant 3 : index
    %c0_70 = arith.constant 0 : index
    %c0_71 = arith.constant 0 : index
    %67 = vector.load %arg4[%c0_67, %c0_68, %c3_69, %c0_70, %c0_71] : memref<1x2x8x8x128xf32, #tpu.memory_space<vmem>>, vector<1x1x1x8x128xf32>
    %68 = vector.shape_cast %67 : vector<1x1x1x8x128xf32> to vector<8x128xf32>
    %c0_72 = arith.constant 0 : index
    %c1_73 = arith.constant 1 : index
    %c3_74 = arith.constant 3 : index
    %c0_75 = arith.constant 0 : index
    %c0_76 = arith.constant 0 : index
    %69 = vector.load %arg4[%c0_72, %c1_73, %c3_74, %c0_75, %c0_76] : memref<1x2x8x8x128xf32, #tpu.memory_space<vmem>>, vector<1x1x1x8x128xf32>
    %70 = vector.shape_cast %69 : vector<1x1x1x8x128xf32> to vector<8x128xf32>
    %71 = vector.broadcast %64 : vector<1x128xf32> to vector<8x128xf32>
    %72 = arith.mulf %71, %68 : vector<8x128xf32>
    %73 = vector.broadcast %66 : vector<1x128xf32> to vector<8x128xf32>
    %74 = arith.mulf %73, %70 : vector<8x128xf32>
    %75 = arith.subf %72, %74 : vector<8x128xf32>
    %76 = arith.addf %56, %75 : vector<8x128xf32>
    %77 = vector.broadcast %64 : vector<1x128xf32> to vector<8x128xf32>
    %78 = arith.mulf %77, %70 : vector<8x128xf32>
    %79 = vector.broadcast %66 : vector<1x128xf32> to vector<8x128xf32>
    %80 = arith.mulf %79, %68 : vector<8x128xf32>
    %81 = arith.addf %78, %80 : vector<8x128xf32>
    %82 = arith.addf %62, %81 : vector<8x128xf32>
    %c0_77 = arith.constant 0 : index
    %c0_78 = arith.constant 0 : index
    %c0_79 = arith.constant 0 : index
    %c4 = arith.constant 4 : index
    %c0_80 = arith.constant 0 : index
    %83 = vector.load %arg3[%c0_77, %c0_78, %c0_79, %c4, %c0_80] : memref<1x2x2x8x128xf32, #tpu.memory_space<vmem>>, vector<1x1x1x1x128xf32>
    %84 = vector.shape_cast %83 : vector<1x1x1x1x128xf32> to vector<1x128xf32>
    %c0_81 = arith.constant 0 : index
    %c1_82 = arith.constant 1 : index
    %c0_83 = arith.constant 0 : index
    %c4_84 = arith.constant 4 : index
    %c0_85 = arith.constant 0 : index
    %85 = vector.load %arg3[%c0_81, %c1_82, %c0_83, %c4_84, %c0_85] : memref<1x2x2x8x128xf32, #tpu.memory_space<vmem>>, vector<1x1x1x1x128xf32>
    %86 = vector.shape_cast %85 : vector<1x1x1x1x128xf32> to vector<1x128xf32>
    %c0_86 = arith.constant 0 : index
    %c0_87 = arith.constant 0 : index
    %c4_88 = arith.constant 4 : index
    %c0_89 = arith.constant 0 : index
    %c0_90 = arith.constant 0 : index
    %87 = vector.load %arg4[%c0_86, %c0_87, %c4_88, %c0_89, %c0_90] : memref<1x2x8x8x128xf32, #tpu.memory_space<vmem>>, vector<1x1x1x8x128xf32>
    %88 = vector.shape_cast %87 : vector<1x1x1x8x128xf32> to vector<8x128xf32>
    %c0_91 = arith.constant 0 : index
    %c1_92 = arith.constant 1 : index
    %c4_93 = arith.constant 4 : index
    %c0_94 = arith.constant 0 : index
    %c0_95 = arith.constant 0 : index
    %89 = vector.load %arg4[%c0_91, %c1_92, %c4_93, %c0_94, %c0_95] : memref<1x2x8x8x128xf32, #tpu.memory_space<vmem>>, vector<1x1x1x8x128xf32>
    %90 = vector.shape_cast %89 : vector<1x1x1x8x128xf32> to vector<8x128xf32>
    %91 = vector.broadcast %84 : vector<1x128xf32> to vector<8x128xf32>
    %92 = arith.mulf %91, %88 : vector<8x128xf32>
    %93 = vector.broadcast %86 : vector<1x128xf32> to vector<8x128xf32>
    %94 = arith.mulf %93, %90 : vector<8x128xf32>
    %95 = arith.subf %92, %94 : vector<8x128xf32>
    %96 = arith.addf %76, %95 : vector<8x128xf32>
    %97 = vector.broadcast %84 : vector<1x128xf32> to vector<8x128xf32>
    %98 = arith.mulf %97, %90 : vector<8x128xf32>
    %99 = vector.broadcast %86 : vector<1x128xf32> to vector<8x128xf32>
    %100 = arith.mulf %99, %88 : vector<8x128xf32>
    %101 = arith.addf %98, %100 : vector<8x128xf32>
    %102 = arith.addf %82, %101 : vector<8x128xf32>
    %c0_96 = arith.constant 0 : index
    %c0_97 = arith.constant 0 : index
    %c0_98 = arith.constant 0 : index
    %c5 = arith.constant 5 : index
    %c0_99 = arith.constant 0 : index
    %103 = vector.load %arg3[%c0_96, %c0_97, %c0_98, %c5, %c0_99] : memref<1x2x2x8x128xf32, #tpu.memory_space<vmem>>, vector<1x1x1x1x128xf32>
    %104 = vector.shape_cast %103 : vector<1x1x1x1x128xf32> to vector<1x128xf32>
    %c0_100 = arith.constant 0 : index
    %c1_101 = arith.constant 1 : index
    %c0_102 = arith.constant 0 : index
    %c5_103 = arith.constant 5 : index
    %c0_104 = arith.constant 0 : index
    %105 = vector.load %arg3[%c0_100, %c1_101, %c0_102, %c5_103, %c0_104] : memref<1x2x2x8x128xf32, #tpu.memory_space<vmem>>, vector<1x1x1x1x128xf32>
    %106 = vector.shape_cast %105 : vector<1x1x1x1x128xf32> to vector<1x128xf32>
    %c0_105 = arith.constant 0 : index
    %c0_106 = arith.constant 0 : index
    %c5_107 = arith.constant 5 : index
    %c0_108 = arith.constant 0 : index
    %c0_109 = arith.constant 0 : index
    %107 = vector.load %arg4[%c0_105, %c0_106, %c5_107, %c0_108, %c0_109] : memref<1x2x8x8x128xf32, #tpu.memory_space<vmem>>, vector<1x1x1x8x128xf32>
    %108 = vector.shape_cast %107 : vector<1x1x1x8x128xf32> to vector<8x128xf32>
    %c0_110 = arith.constant 0 : index
    %c1_111 = arith.constant 1 : index
    %c5_112 = arith.constant 5 : index
    %c0_113 = arith.constant 0 : index
    %c0_114 = arith.constant 0 : index
    %109 = vector.load %arg4[%c0_110, %c1_111, %c5_112, %c0_113, %c0_114] : memref<1x2x8x8x128xf32, #tpu.memory_space<vmem>>, vector<1x1x1x8x128xf32>
    %110 = vector.shape_cast %109 : vector<1x1x1x8x128xf32> to vector<8x128xf32>
    %111 = vector.broadcast %104 : vector<1x128xf32> to vector<8x128xf32>
    %112 = arith.mulf %111, %108 : vector<8x128xf32>
    %113 = vector.broadcast %106 : vector<1x128xf32> to vector<8x128xf32>
    %114 = arith.mulf %113, %110 : vector<8x128xf32>
    %115 = arith.subf %112, %114 : vector<8x128xf32>
    %116 = arith.addf %96, %115 : vector<8x128xf32>
    %117 = vector.broadcast %104 : vector<1x128xf32> to vector<8x128xf32>
    %118 = arith.mulf %117, %110 : vector<8x128xf32>
    %119 = vector.broadcast %106 : vector<1x128xf32> to vector<8x128xf32>
    %120 = arith.mulf %119, %108 : vector<8x128xf32>
    %121 = arith.addf %118, %120 : vector<8x128xf32>
    %122 = arith.addf %102, %121 : vector<8x128xf32>
    %c0_115 = arith.constant 0 : index
    %c0_116 = arith.constant 0 : index
    %c0_117 = arith.constant 0 : index
    %c6 = arith.constant 6 : index
    %c0_118 = arith.constant 0 : index
    %123 = vector.load %arg3[%c0_115, %c0_116, %c0_117, %c6, %c0_118] : memref<1x2x2x8x128xf32, #tpu.memory_space<vmem>>, vector<1x1x1x1x128xf32>
    %124 = vector.shape_cast %123 : vector<1x1x1x1x128xf32> to vector<1x128xf32>
    %c0_119 = arith.constant 0 : index
    %c1_120 = arith.constant 1 : index
    %c0_121 = arith.constant 0 : index
    %c6_122 = arith.constant 6 : index
    %c0_123 = arith.constant 0 : index
    %125 = vector.load %arg3[%c0_119, %c1_120, %c0_121, %c6_122, %c0_123] : memref<1x2x2x8x128xf32, #tpu.memory_space<vmem>>, vector<1x1x1x1x128xf32>
    %126 = vector.shape_cast %125 : vector<1x1x1x1x128xf32> to vector<1x128xf32>
    %c0_124 = arith.constant 0 : index
    %c0_125 = arith.constant 0 : index
    %c6_126 = arith.constant 6 : index
    %c0_127 = arith.constant 0 : index
    %c0_128 = arith.constant 0 : index
    %127 = vector.load %arg4[%c0_124, %c0_125, %c6_126, %c0_127, %c0_128] : memref<1x2x8x8x128xf32, #tpu.memory_space<vmem>>, vector<1x1x1x8x128xf32>
    %128 = vector.shape_cast %127 : vector<1x1x1x8x128xf32> to vector<8x128xf32>
    %c0_129 = arith.constant 0 : index
    %c1_130 = arith.constant 1 : index
    %c6_131 = arith.constant 6 : index
    %c0_132 = arith.constant 0 : index
    %c0_133 = arith.constant 0 : index
    %129 = vector.load %arg4[%c0_129, %c1_130, %c6_131, %c0_132, %c0_133] : memref<1x2x8x8x128xf32, #tpu.memory_space<vmem>>, vector<1x1x1x8x128xf32>
    %130 = vector.shape_cast %129 : vector<1x1x1x8x128xf32> to vector<8x128xf32>
    %131 = vector.broadcast %124 : vector<1x128xf32> to vector<8x128xf32>
    %132 = arith.mulf %131, %128 : vector<8x128xf32>
    %133 = vector.broadcast %126 : vector<1x128xf32> to vector<8x128xf32>
    %134 = arith.mulf %133, %130 : vector<8x128xf32>
    %135 = arith.subf %132, %134 : vector<8x128xf32>
    %136 = arith.addf %116, %135 : vector<8x128xf32>
    %137 = vector.broadcast %124 : vector<1x128xf32> to vector<8x128xf32>
    %138 = arith.mulf %137, %130 : vector<8x128xf32>
    %139 = vector.broadcast %126 : vector<1x128xf32> to vector<8x128xf32>
    %140 = arith.mulf %139, %128 : vector<8x128xf32>
    %141 = arith.addf %138, %140 : vector<8x128xf32>
    %142 = arith.addf %122, %141 : vector<8x128xf32>
    %c0_134 = arith.constant 0 : index
    %c0_135 = arith.constant 0 : index
    %c0_136 = arith.constant 0 : index
    %c7 = arith.constant 7 : index
    %c0_137 = arith.constant 0 : index
    %143 = vector.load %arg3[%c0_134, %c0_135, %c0_136, %c7, %c0_137] : memref<1x2x2x8x128xf32, #tpu.memory_space<vmem>>, vector<1x1x1x1x128xf32>
    %144 = vector.shape_cast %143 : vector<1x1x1x1x128xf32> to vector<1x128xf32>
    %c0_138 = arith.constant 0 : index
    %c1_139 = arith.constant 1 : index
    %c0_140 = arith.constant 0 : index
    %c7_141 = arith.constant 7 : index
    %c0_142 = arith.constant 0 : index
    %145 = vector.load %arg3[%c0_138, %c1_139, %c0_140, %c7_141, %c0_142] : memref<1x2x2x8x128xf32, #tpu.memory_space<vmem>>, vector<1x1x1x1x128xf32>
    %146 = vector.shape_cast %145 : vector<1x1x1x1x128xf32> to vector<1x128xf32>
    %c0_143 = arith.constant 0 : index
    %c0_144 = arith.constant 0 : index
    %c7_145 = arith.constant 7 : index
    %c0_146 = arith.constant 0 : index
    %c0_147 = arith.constant 0 : index
    %147 = vector.load %arg4[%c0_143, %c0_144, %c7_145, %c0_146, %c0_147] : memref<1x2x8x8x128xf32, #tpu.memory_space<vmem>>, vector<1x1x1x8x128xf32>
    %148 = vector.shape_cast %147 : vector<1x1x1x8x128xf32> to vector<8x128xf32>
    %c0_148 = arith.constant 0 : index
    %c1_149 = arith.constant 1 : index
    %c7_150 = arith.constant 7 : index
    %c0_151 = arith.constant 0 : index
    %c0_152 = arith.constant 0 : index
    %149 = vector.load %arg4[%c0_148, %c1_149, %c7_150, %c0_151, %c0_152] : memref<1x2x8x8x128xf32, #tpu.memory_space<vmem>>, vector<1x1x1x8x128xf32>
    %150 = vector.shape_cast %149 : vector<1x1x1x8x128xf32> to vector<8x128xf32>
    %151 = vector.broadcast %144 : vector<1x128xf32> to vector<8x128xf32>
    %152 = arith.mulf %151, %148 : vector<8x128xf32>
    %153 = vector.broadcast %146 : vector<1x128xf32> to vector<8x128xf32>
    %154 = arith.mulf %153, %150 : vector<8x128xf32>
    %155 = arith.subf %152, %154 : vector<8x128xf32>
    %156 = arith.addf %136, %155 : vector<8x128xf32>
    %157 = vector.broadcast %144 : vector<1x128xf32> to vector<8x128xf32>
    %158 = arith.mulf %157, %150 : vector<8x128xf32>
    %159 = vector.broadcast %146 : vector<1x128xf32> to vector<8x128xf32>
    %160 = arith.mulf %159, %148 : vector<8x128xf32>
    %161 = arith.addf %158, %160 : vector<8x128xf32>
    %162 = arith.addf %142, %161 : vector<8x128xf32>
    %163 = arith.extui %0 : i1 to i32
    %c0_i32_153 = arith.constant 0 : i32
    %164 = arith.cmpi ne, %163, %c0_i32_153 : i32
    scf.if %164 {
      %c0_320 = arith.constant 0 : index
      %c0_321 = arith.constant 0 : index
      %c0_322 = arith.constant 0 : index
      %c0_323 = arith.constant 0 : index
      %c0_324 = arith.constant 0 : index
      %335 = vector.load %arg5[%c0_320, %c0_321, %c0_322, %c0_323, %c0_324] : memref<1x2x2x8x128xf32, #tpu.memory_space<vmem>>, vector<1x1x1x8x128xf32>
      %336 = vector.shape_cast %335 : vector<1x1x1x8x128xf32> to vector<8x128xf32>
      %337 = vector.shape_cast %156 : vector<8x128xf32> to vector<1x1x1x8x128xf32>
      tpu.vector_store %arg5[%c0_320, %c0_321, %c0_322, %c0_323, %c0_324], %337 {strides = array<i32>} : memref<1x2x2x8x128xf32, #tpu.memory_space<vmem>>, vector<1x1x1x8x128xf32>,
      %c0_325 = arith.constant 0 : index
      %c1_326 = arith.constant 1 : index
      %c0_327 = arith.constant 0 : index
      %c0_328 = arith.constant 0 : index
      %c0_329 = arith.constant 0 : index
      %338 = vector.load %arg5[%c0_325, %c1_326, %c0_327, %c0_328, %c0_329] : memref<1x2x2x8x128xf32, #tpu.memory_space<vmem>>, vector<1x1x1x8x128xf32>
      %339 = vector.shape_cast %338 : vector<1x1x1x8x128xf32> to vector<8x128xf32>
      %340 = vector.shape_cast %162 : vector<8x128xf32> to vector<1x1x1x8x128xf32>
      tpu.vector_store %arg5[%c0_325, %c1_326, %c0_327, %c0_328, %c0_329], %340 {strides = array<i32>} : memref<1x2x2x8x128xf32, #tpu.memory_space<vmem>>, vector<1x1x1x8x128xf32>,
    } else {
    }
    %true = arith.constant true
    %165 = arith.xori %0, %true : i1
    %166 = arith.extui %165 : i1 to i32
    %c0_i32_154 = arith.constant 0 : i32
    %167 = arith.cmpi ne, %166, %c0_i32_154 : i32
    scf.if %167 {
      %c0_320 = arith.constant 0 : index
      %c0_321 = arith.constant 0 : index
      %c0_322 = arith.constant 0 : index
      %c0_323 = arith.constant 0 : index
      %c0_324 = arith.constant 0 : index
      %335 = vector.load %arg5[%c0_320, %c0_321, %c0_322, %c0_323, %c0_324] : memref<1x2x2x8x128xf32, #tpu.memory_space<vmem>>, vector<1x1x1x8x128xf32>
      %336 = vector.shape_cast %335 : vector<1x1x1x8x128xf32> to vector<8x128xf32>
      %337 = arith.addf %336, %156 : vector<8x128xf32>
      %c0_325 = arith.constant 0 : index
      %c0_326 = arith.constant 0 : index
      %c0_327 = arith.constant 0 : index
      %c0_328 = arith.constant 0 : index
      %c0_329 = arith.constant 0 : index
      %338 = vector.load %arg5[%c0_325, %c0_326, %c0_327, %c0_328, %c0_329] : memref<1x2x2x8x128xf32, #tpu.memory_space<vmem>>, vector<1x1x1x8x128xf32>
      %339 = vector.shape_cast %338 : vector<1x1x1x8x128xf32> to vector<8x128xf32>
      %340 = vector.shape_cast %337 : vector<8x128xf32> to vector<1x1x1x8x128xf32>
      tpu.vector_store %arg5[%c0_325, %c0_326, %c0_327, %c0_328, %c0_329], %340 {strides = array<i32>} : memref<1x2x2x8x128xf32, #tpu.memory_space<vmem>>, vector<1x1x1x8x128xf32>,
      %c0_330 = arith.constant 0 : index
      %c1_331 = arith.constant 1 : index
      %c0_332 = arith.constant 0 : index
      %c0_333 = arith.constant 0 : index
      %c0_334 = arith.constant 0 : index
      %341 = vector.load %arg5[%c0_330, %c1_331, %c0_332, %c0_333, %c0_334] : memref<1x2x2x8x128xf32, #tpu.memory_space<vmem>>, vector<1x1x1x8x128xf32>
      %342 = vector.shape_cast %341 : vector<1x1x1x8x128xf32> to vector<8x128xf32>
      %343 = arith.addf %342, %162 : vector<8x128xf32>
      %c0_335 = arith.constant 0 : index
      %c1_336 = arith.constant 1 : index
      %c0_337 = arith.constant 0 : index
      %c0_338 = arith.constant 0 : index
      %c0_339 = arith.constant 0 : index
      %344 = vector.load %arg5[%c0_335, %c1_336, %c0_337, %c0_338, %c0_339] : memref<1x2x2x8x128xf32, #tpu.memory_space<vmem>>, vector<1x1x1x8x128xf32>
      %345 = vector.shape_cast %344 : vector<1x1x1x8x128xf32> to vector<8x128xf32>
      %346 = vector.shape_cast %343 : vector<8x128xf32> to vector<1x1x1x8x128xf32>
      tpu.vector_store %arg5[%c0_335, %c1_336, %c0_337, %c0_338, %c0_339], %346 {strides = array<i32>} : memref<1x2x2x8x128xf32, #tpu.memory_space<vmem>>, vector<1x1x1x8x128xf32>,
    } else {
    }
    %cst_155 = arith.constant 0.000000e+00 : f32
    %168 = vector.broadcast %cst_155 : f32 to vector<8x128xf32>
    %cst_156 = arith.constant 0.000000e+00 : f32
    %169 = vector.broadcast %cst_156 : f32 to vector<8x128xf32>
    %c0_157 = arith.constant 0 : index
    %c0_158 = arith.constant 0 : index
    %c1_159 = arith.constant 1 : index
    %c0_160 = arith.constant 0 : index
    %c0_161 = arith.constant 0 : index
    %170 = vector.load %arg3[%c0_157, %c0_158, %c1_159, %c0_160, %c0_161] : memref<1x2x2x8x128xf32, #tpu.memory_space<vmem>>, vector<1x1x1x1x128xf32>
    %171 = vector.shape_cast %170 : vector<1x1x1x1x128xf32> to vector<1x128xf32>
    %c0_162 = arith.constant 0 : index
    %c1_163 = arith.constant 1 : index
    %c1_164 = arith.constant 1 : index
    %c0_165 = arith.constant 0 : index
    %c0_166 = arith.constant 0 : index
    %172 = vector.load %arg3[%c0_162, %c1_163, %c1_164, %c0_165, %c0_166] : memref<1x2x2x8x128xf32, #tpu.memory_space<vmem>>, vector<1x1x1x1x128xf32>
    %173 = vector.shape_cast %172 : vector<1x1x1x1x128xf32> to vector<1x128xf32>
    %c0_167 = arith.constant 0 : index
    %c0_168 = arith.constant 0 : index
    %c0_169 = arith.constant 0 : index
    %c0_170 = arith.constant 0 : index
    %c0_171 = arith.constant 0 : index
    %174 = vector.load %arg4[%c0_167, %c0_168, %c0_169, %c0_170, %c0_171] : memref<1x2x8x8x128xf32, #tpu.memory_space<vmem>>, vector<1x1x1x8x128xf32>
    %175 = vector.shape_cast %174 : vector<1x1x1x8x128xf32> to vector<8x128xf32>
    %c0_172 = arith.constant 0 : index
    %c1_173 = arith.constant 1 : index
    %c0_174 = arith.constant 0 : index
    %c0_175 = arith.constant 0 : index
    %c0_176 = arith.constant 0 : index
    %176 = vector.load %arg4[%c0_172, %c1_173, %c0_174, %c0_175, %c0_176] : memref<1x2x8x8x128xf32, #tpu.memory_space<vmem>>, vector<1x1x1x8x128xf32>
    %177 = vector.shape_cast %176 : vector<1x1x1x8x128xf32> to vector<8x128xf32>
    %178 = vector.broadcast %171 : vector<1x128xf32> to vector<8x128xf32>
    %179 = arith.mulf %178, %175 : vector<8x128xf32>
    %180 = vector.broadcast %173 : vector<1x128xf32> to vector<8x128xf32>
    %181 = arith.mulf %180, %177 : vector<8x128xf32>
    %182 = arith.subf %179, %181 : vector<8x128xf32>
    %183 = arith.addf %168, %182 : vector<8x128xf32>
    %184 = vector.broadcast %171 : vector<1x128xf32> to vector<8x128xf32>
    %185 = arith.mulf %184, %177 : vector<8x128xf32>
    %186 = vector.broadcast %173 : vector<1x128xf32> to vector<8x128xf32>
    %187 = arith.mulf %186, %175 : vector<8x128xf32>
    %188 = arith.addf %185, %187 : vector<8x128xf32>
    %189 = arith.addf %169, %188 : vector<8x128xf32>
    %c0_177 = arith.constant 0 : index
    %c0_178 = arith.constant 0 : index
    %c1_179 = arith.constant 1 : index
    %c1_180 = arith.constant 1 : index
    %c0_181 = arith.constant 0 : index
    %190 = vector.load %arg3[%c0_177, %c0_178, %c1_179, %c1_180, %c0_181] : memref<1x2x2x8x128xf32, #tpu.memory_space<vmem>>, vector<1x1x1x1x128xf32>
    %191 = vector.shape_cast %190 : vector<1x1x1x1x128xf32> to vector<1x128xf32>
    %c0_182 = arith.constant 0 : index
    %c1_183 = arith.constant 1 : index
    %c1_184 = arith.constant 1 : index
    %c1_185 = arith.constant 1 : index
    %c0_186 = arith.constant 0 : index
    %192 = vector.load %arg3[%c0_182, %c1_183, %c1_184, %c1_185, %c0_186] : memref<1x2x2x8x128xf32, #tpu.memory_space<vmem>>, vector<1x1x1x1x128xf32>
    %193 = vector.shape_cast %192 : vector<1x1x1x1x128xf32> to vector<1x128xf32>
    %c0_187 = arith.constant 0 : index
    %c0_188 = arith.constant 0 : index
    %c1_189 = arith.constant 1 : index
    %c0_190 = arith.constant 0 : index
    %c0_191 = arith.constant 0 : index
    %194 = vector.load %arg4[%c0_187, %c0_188, %c1_189, %c0_190, %c0_191] : memref<1x2x8x8x128xf32, #tpu.memory_space<vmem>>, vector<1x1x1x8x128xf32>
    %195 = vector.shape_cast %194 : vector<1x1x1x8x128xf32> to vector<8x128xf32>
    %c0_192 = arith.constant 0 : index
    %c1_193 = arith.constant 1 : index
    %c1_194 = arith.constant 1 : index
    %c0_195 = arith.constant 0 : index
    %c0_196 = arith.constant 0 : index
    %196 = vector.load %arg4[%c0_192, %c1_193, %c1_194, %c0_195, %c0_196] : memref<1x2x8x8x128xf32, #tpu.memory_space<vmem>>, vector<1x1x1x8x128xf32>
    %197 = vector.shape_cast %196 : vector<1x1x1x8x128xf32> to vector<8x128xf32>
    %198 = vector.broadcast %191 : vector<1x128xf32> to vector<8x128xf32>
    %199 = arith.mulf %198, %195 : vector<8x128xf32>
    %200 = vector.broadcast %193 : vector<1x128xf32> to vector<8x128xf32>
    %201 = arith.mulf %200, %197 : vector<8x128xf32>
    %202 = arith.subf %199, %201 : vector<8x128xf32>
    %203 = arith.addf %183, %202 : vector<8x128xf32>
    %204 = vector.broadcast %191 : vector<1x128xf32> to vector<8x128xf32>
    %205 = arith.mulf %204, %197 : vector<8x128xf32>
    %206 = vector.broadcast %193 : vector<1x128xf32> to vector<8x128xf32>
    %207 = arith.mulf %206, %195 : vector<8x128xf32>
    %208 = arith.addf %205, %207 : vector<8x128xf32>
    %209 = arith.addf %189, %208 : vector<8x128xf32>
    %c0_197 = arith.constant 0 : index
    %c0_198 = arith.constant 0 : index
    %c1_199 = arith.constant 1 : index
    %c2_200 = arith.constant 2 : index
    %c0_201 = arith.constant 0 : index
    %210 = vector.load %arg3[%c0_197, %c0_198, %c1_199, %c2_200, %c0_201] : memref<1x2x2x8x128xf32, #tpu.memory_space<vmem>>, vector<1x1x1x1x128xf32>
    %211 = vector.shape_cast %210 : vector<1x1x1x1x128xf32> to vector<1x128xf32>
    %c0_202 = arith.constant 0 : index
    %c1_203 = arith.constant 1 : index
    %c1_204 = arith.constant 1 : index
    %c2_205 = arith.constant 2 : index
    %c0_206 = arith.constant 0 : index
    %212 = vector.load %arg3[%c0_202, %c1_203, %c1_204, %c2_205, %c0_206] : memref<1x2x2x8x128xf32, #tpu.memory_space<vmem>>, vector<1x1x1x1x128xf32>
    %213 = vector.shape_cast %212 : vector<1x1x1x1x128xf32> to vector<1x128xf32>
    %c0_207 = arith.constant 0 : index
    %c0_208 = arith.constant 0 : index
    %c2_209 = arith.constant 2 : index
    %c0_210 = arith.constant 0 : index
    %c0_211 = arith.constant 0 : index
    %214 = vector.load %arg4[%c0_207, %c0_208, %c2_209, %c0_210, %c0_211] : memref<1x2x8x8x128xf32, #tpu.memory_space<vmem>>, vector<1x1x1x8x128xf32>
    %215 = vector.shape_cast %214 : vector<1x1x1x8x128xf32> to vector<8x128xf32>
    %c0_212 = arith.constant 0 : index
    %c1_213 = arith.constant 1 : index
    %c2_214 = arith.constant 2 : index
    %c0_215 = arith.constant 0 : index
    %c0_216 = arith.constant 0 : index
    %216 = vector.load %arg4[%c0_212, %c1_213, %c2_214, %c0_215, %c0_216] : memref<1x2x8x8x128xf32, #tpu.memory_space<vmem>>, vector<1x1x1x8x128xf32>
    %217 = vector.shape_cast %216 : vector<1x1x1x8x128xf32> to vector<8x128xf32>
    %218 = vector.broadcast %211 : vector<1x128xf32> to vector<8x128xf32>
    %219 = arith.mulf %218, %215 : vector<8x128xf32>
    %220 = vector.broadcast %213 : vector<1x128xf32> to vector<8x128xf32>
    %221 = arith.mulf %220, %217 : vector<8x128xf32>
    %222 = arith.subf %219, %221 : vector<8x128xf32>
    %223 = arith.addf %203, %222 : vector<8x128xf32>
    %224 = vector.broadcast %211 : vector<1x128xf32> to vector<8x128xf32>
    %225 = arith.mulf %224, %217 : vector<8x128xf32>
    %226 = vector.broadcast %213 : vector<1x128xf32> to vector<8x128xf32>
    %227 = arith.mulf %226, %215 : vector<8x128xf32>
    %228 = arith.addf %225, %227 : vector<8x128xf32>
    %229 = arith.addf %209, %228 : vector<8x128xf32>
    %c0_217 = arith.constant 0 : index
    %c0_218 = arith.constant 0 : index
    %c1_219 = arith.constant 1 : index
    %c3_220 = arith.constant 3 : index
    %c0_221 = arith.constant 0 : index
    %230 = vector.load %arg3[%c0_217, %c0_218, %c1_219, %c3_220, %c0_221] : memref<1x2x2x8x128xf32, #tpu.memory_space<vmem>>, vector<1x1x1x1x128xf32>
    %231 = vector.shape_cast %230 : vector<1x1x1x1x128xf32> to vector<1x128xf32>
    %c0_222 = arith.constant 0 : index
    %c1_223 = arith.constant 1 : index
    %c1_224 = arith.constant 1 : index
    %c3_225 = arith.constant 3 : index
    %c0_226 = arith.constant 0 : index
    %232 = vector.load %arg3[%c0_222, %c1_223, %c1_224, %c3_225, %c0_226] : memref<1x2x2x8x128xf32, #tpu.memory_space<vmem>>, vector<1x1x1x1x128xf32>
    %233 = vector.shape_cast %232 : vector<1x1x1x1x128xf32> to vector<1x128xf32>
    %c0_227 = arith.constant 0 : index
    %c0_228 = arith.constant 0 : index
    %c3_229 = arith.constant 3 : index
    %c0_230 = arith.constant 0 : index
    %c0_231 = arith.constant 0 : index
    %234 = vector.load %arg4[%c0_227, %c0_228, %c3_229, %c0_230, %c0_231] : memref<1x2x8x8x128xf32, #tpu.memory_space<vmem>>, vector<1x1x1x8x128xf32>
    %235 = vector.shape_cast %234 : vector<1x1x1x8x128xf32> to vector<8x128xf32>
    %c0_232 = arith.constant 0 : index
    %c1_233 = arith.constant 1 : index
    %c3_234 = arith.constant 3 : index
    %c0_235 = arith.constant 0 : index
    %c0_236 = arith.constant 0 : index
    %236 = vector.load %arg4[%c0_232, %c1_233, %c3_234, %c0_235, %c0_236] : memref<1x2x8x8x128xf32, #tpu.memory_space<vmem>>, vector<1x1x1x8x128xf32>
    %237 = vector.shape_cast %236 : vector<1x1x1x8x128xf32> to vector<8x128xf32>
    %238 = vector.broadcast %231 : vector<1x128xf32> to vector<8x128xf32>
    %239 = arith.mulf %238, %235 : vector<8x128xf32>
    %240 = vector.broadcast %233 : vector<1x128xf32> to vector<8x128xf32>
    %241 = arith.mulf %240, %237 : vector<8x128xf32>
    %242 = arith.subf %239, %241 : vector<8x128xf32>
    %243 = arith.addf %223, %242 : vector<8x128xf32>
    %244 = vector.broadcast %231 : vector<1x128xf32> to vector<8x128xf32>
    %245 = arith.mulf %244, %237 : vector<8x128xf32>
    %246 = vector.broadcast %233 : vector<1x128xf32> to vector<8x128xf32>
    %247 = arith.mulf %246, %235 : vector<8x128xf32>
    %248 = arith.addf %245, %247 : vector<8x128xf32>
    %249 = arith.addf %229, %248 : vector<8x128xf32>
    %c0_237 = arith.constant 0 : index
    %c0_238 = arith.constant 0 : index
    %c1_239 = arith.constant 1 : index
    %c4_240 = arith.constant 4 : index
    %c0_241 = arith.constant 0 : index
    %250 = vector.load %arg3[%c0_237, %c0_238, %c1_239, %c4_240, %c0_241] : memref<1x2x2x8x128xf32, #tpu.memory_space<vmem>>, vector<1x1x1x1x128xf32>
    %251 = vector.shape_cast %250 : vector<1x1x1x1x128xf32> to vector<1x128xf32>
    %c0_242 = arith.constant 0 : index
    %c1_243 = arith.constant 1 : index
    %c1_244 = arith.constant 1 : index
    %c4_245 = arith.constant 4 : index
    %c0_246 = arith.constant 0 : index
    %252 = vector.load %arg3[%c0_242, %c1_243, %c1_244, %c4_245, %c0_246] : memref<1x2x2x8x128xf32, #tpu.memory_space<vmem>>, vector<1x1x1x1x128xf32>
    %253 = vector.shape_cast %252 : vector<1x1x1x1x128xf32> to vector<1x128xf32>
    %c0_247 = arith.constant 0 : index
    %c0_248 = arith.constant 0 : index
    %c4_249 = arith.constant 4 : index
    %c0_250 = arith.constant 0 : index
    %c0_251 = arith.constant 0 : index
    %254 = vector.load %arg4[%c0_247, %c0_248, %c4_249, %c0_250, %c0_251] : memref<1x2x8x8x128xf32, #tpu.memory_space<vmem>>, vector<1x1x1x8x128xf32>
    %255 = vector.shape_cast %254 : vector<1x1x1x8x128xf32> to vector<8x128xf32>
    %c0_252 = arith.constant 0 : index
    %c1_253 = arith.constant 1 : index
    %c4_254 = arith.constant 4 : index
    %c0_255 = arith.constant 0 : index
    %c0_256 = arith.constant 0 : index
    %256 = vector.load %arg4[%c0_252, %c1_253, %c4_254, %c0_255, %c0_256] : memref<1x2x8x8x128xf32, #tpu.memory_space<vmem>>, vector<1x1x1x8x128xf32>
    %257 = vector.shape_cast %256 : vector<1x1x1x8x128xf32> to vector<8x128xf32>
    %258 = vector.broadcast %251 : vector<1x128xf32> to vector<8x128xf32>
    %259 = arith.mulf %258, %255 : vector<8x128xf32>
    %260 = vector.broadcast %253 : vector<1x128xf32> to vector<8x128xf32>
    %261 = arith.mulf %260, %257 : vector<8x128xf32>
    %262 = arith.subf %259, %261 : vector<8x128xf32>
    %263 = arith.addf %243, %262 : vector<8x128xf32>
    %264 = vector.broadcast %251 : vector<1x128xf32> to vector<8x128xf32>
    %265 = arith.mulf %264, %257 : vector<8x128xf32>
    %266 = vector.broadcast %253 : vector<1x128xf32> to vector<8x128xf32>
    %267 = arith.mulf %266, %255 : vector<8x128xf32>
    %268 = arith.addf %265, %267 : vector<8x128xf32>
    %269 = arith.addf %249, %268 : vector<8x128xf32>
    %c0_257 = arith.constant 0 : index
    %c0_258 = arith.constant 0 : index
    %c1_259 = arith.constant 1 : index
    %c5_260 = arith.constant 5 : index
    %c0_261 = arith.constant 0 : index
    %270 = vector.load %arg3[%c0_257, %c0_258, %c1_259, %c5_260, %c0_261] : memref<1x2x2x8x128xf32, #tpu.memory_space<vmem>>, vector<1x1x1x1x128xf32>
    %271 = vector.shape_cast %270 : vector<1x1x1x1x128xf32> to vector<1x128xf32>
    %c0_262 = arith.constant 0 : index
    %c1_263 = arith.constant 1 : index
    %c1_264 = arith.constant 1 : index
    %c5_265 = arith.constant 5 : index
    %c0_266 = arith.constant 0 : index
    %272 = vector.load %arg3[%c0_262, %c1_263, %c1_264, %c5_265, %c0_266] : memref<1x2x2x8x128xf32, #tpu.memory_space<vmem>>, vector<1x1x1x1x128xf32>
    %273 = vector.shape_cast %272 : vector<1x1x1x1x128xf32> to vector<1x128xf32>
    %c0_267 = arith.constant 0 : index
    %c0_268 = arith.constant 0 : index
    %c5_269 = arith.constant 5 : index
    %c0_270 = arith.constant 0 : index
    %c0_271 = arith.constant 0 : index
    %274 = vector.load %arg4[%c0_267, %c0_268, %c5_269, %c0_270, %c0_271] : memref<1x2x8x8x128xf32, #tpu.memory_space<vmem>>, vector<1x1x1x8x128xf32>
    %275 = vector.shape_cast %274 : vector<1x1x1x8x128xf32> to vector<8x128xf32>
    %c0_272 = arith.constant 0 : index
    %c1_273 = arith.constant 1 : index
    %c5_274 = arith.constant 5 : index
    %c0_275 = arith.constant 0 : index
    %c0_276 = arith.constant 0 : index
    %276 = vector.load %arg4[%c0_272, %c1_273, %c5_274, %c0_275, %c0_276] : memref<1x2x8x8x128xf32, #tpu.memory_space<vmem>>, vector<1x1x1x8x128xf32>
    %277 = vector.shape_cast %276 : vector<1x1x1x8x128xf32> to vector<8x128xf32>
    %278 = vector.broadcast %271 : vector<1x128xf32> to vector<8x128xf32>
    %279 = arith.mulf %278, %275 : vector<8x128xf32>
    %280 = vector.broadcast %273 : vector<1x128xf32> to vector<8x128xf32>
    %281 = arith.mulf %280, %277 : vector<8x128xf32>
    %282 = arith.subf %279, %281 : vector<8x128xf32>
    %283 = arith.addf %263, %282 : vector<8x128xf32>
    %284 = vector.broadcast %271 : vector<1x128xf32> to vector<8x128xf32>
    %285 = arith.mulf %284, %277 : vector<8x128xf32>
    %286 = vector.broadcast %273 : vector<1x128xf32> to vector<8x128xf32>
    %287 = arith.mulf %286, %275 : vector<8x128xf32>
    %288 = arith.addf %285, %287 : vector<8x128xf32>
    %289 = arith.addf %269, %288 : vector<8x128xf32>
    %c0_277 = arith.constant 0 : index
    %c0_278 = arith.constant 0 : index
    %c1_279 = arith.constant 1 : index
    %c6_280 = arith.constant 6 : index
    %c0_281 = arith.constant 0 : index
    %290 = vector.load %arg3[%c0_277, %c0_278, %c1_279, %c6_280, %c0_281] : memref<1x2x2x8x128xf32, #tpu.memory_space<vmem>>, vector<1x1x1x1x128xf32>
    %291 = vector.shape_cast %290 : vector<1x1x1x1x128xf32> to vector<1x128xf32>
    %c0_282 = arith.constant 0 : index
    %c1_283 = arith.constant 1 : index
    %c1_284 = arith.constant 1 : index
    %c6_285 = arith.constant 6 : index
    %c0_286 = arith.constant 0 : index
    %292 = vector.load %arg3[%c0_282, %c1_283, %c1_284, %c6_285, %c0_286] : memref<1x2x2x8x128xf32, #tpu.memory_space<vmem>>, vector<1x1x1x1x128xf32>
    %293 = vector.shape_cast %292 : vector<1x1x1x1x128xf32> to vector<1x128xf32>
    %c0_287 = arith.constant 0 : index
    %c0_288 = arith.constant 0 : index
    %c6_289 = arith.constant 6 : index
    %c0_290 = arith.constant 0 : index
    %c0_291 = arith.constant 0 : index
    %294 = vector.load %arg4[%c0_287, %c0_288, %c6_289, %c0_290, %c0_291] : memref<1x2x8x8x128xf32, #tpu.memory_space<vmem>>, vector<1x1x1x8x128xf32>
    %295 = vector.shape_cast %294 : vector<1x1x1x8x128xf32> to vector<8x128xf32>
    %c0_292 = arith.constant 0 : index
    %c1_293 = arith.constant 1 : index
    %c6_294 = arith.constant 6 : index
    %c0_295 = arith.constant 0 : index
    %c0_296 = arith.constant 0 : index
    %296 = vector.load %arg4[%c0_292, %c1_293, %c6_294, %c0_295, %c0_296] : memref<1x2x8x8x128xf32, #tpu.memory_space<vmem>>, vector<1x1x1x8x128xf32>
    %297 = vector.shape_cast %296 : vector<1x1x1x8x128xf32> to vector<8x128xf32>
    %298 = vector.broadcast %291 : vector<1x128xf32> to vector<8x128xf32>
    %299 = arith.mulf %298, %295 : vector<8x128xf32>
    %300 = vector.broadcast %293 : vector<1x128xf32> to vector<8x128xf32>
    %301 = arith.mulf %300, %297 : vector<8x128xf32>
    %302 = arith.subf %299, %301 : vector<8x128xf32>
    %303 = arith.addf %283, %302 : vector<8x128xf32>
    %304 = vector.broadcast %291 : vector<1x128xf32> to vector<8x128xf32>
    %305 = arith.mulf %304, %297 : vector<8x128xf32>
    %306 = vector.broadcast %293 : vector<1x128xf32> to vector<8x128xf32>
    %307 = arith.mulf %306, %295 : vector<8x128xf32>
    %308 = arith.addf %305, %307 : vector<8x128xf32>
    %309 = arith.addf %289, %308 : vector<8x128xf32>
    %c0_297 = arith.constant 0 : index
    %c0_298 = arith.constant 0 : index
    %c1_299 = arith.constant 1 : index
    %c7_300 = arith.constant 7 : index
    %c0_301 = arith.constant 0 : index
    %310 = vector.load %arg3[%c0_297, %c0_298, %c1_299, %c7_300, %c0_301] : memref<1x2x2x8x128xf32, #tpu.memory_space<vmem>>, vector<1x1x1x1x128xf32>
    %311 = vector.shape_cast %310 : vector<1x1x1x1x128xf32> to vector<1x128xf32>
    %c0_302 = arith.constant 0 : index
    %c1_303 = arith.constant 1 : index
    %c1_304 = arith.constant 1 : index
    %c7_305 = arith.constant 7 : index
    %c0_306 = arith.constant 0 : index
    %312 = vector.load %arg3[%c0_302, %c1_303, %c1_304, %c7_305, %c0_306] : memref<1x2x2x8x128xf32, #tpu.memory_space<vmem>>, vector<1x1x1x1x128xf32>
    %313 = vector.shape_cast %312 : vector<1x1x1x1x128xf32> to vector<1x128xf32>
    %c0_307 = arith.constant 0 : index
    %c0_308 = arith.constant 0 : index
    %c7_309 = arith.constant 7 : index
    %c0_310 = arith.constant 0 : index
    %c0_311 = arith.constant 0 : index
    %314 = vector.load %arg4[%c0_307, %c0_308, %c7_309, %c0_310, %c0_311] : memref<1x2x8x8x128xf32, #tpu.memory_space<vmem>>, vector<1x1x1x8x128xf32>
    %315 = vector.shape_cast %314 : vector<1x1x1x8x128xf32> to vector<8x128xf32>
    %c0_312 = arith.constant 0 : index
    %c1_313 = arith.constant 1 : index
    %c7_314 = arith.constant 7 : index
    %c0_315 = arith.constant 0 : index
    %c0_316 = arith.constant 0 : index
    %316 = vector.load %arg4[%c0_312, %c1_313, %c7_314, %c0_315, %c0_316] : memref<1x2x8x8x128xf32, #tpu.memory_space<vmem>>, vector<1x1x1x8x128xf32>
    %317 = vector.shape_cast %316 : vector<1x1x1x8x128xf32> to vector<8x128xf32>
    %318 = vector.broadcast %311 : vector<1x128xf32> to vector<8x128xf32>
    %319 = arith.mulf %318, %315 : vector<8x128xf32>
    %320 = vector.broadcast %313 : vector<1x128xf32> to vector<8x128xf32>
    %321 = arith.mulf %320, %317 : vector<8x128xf32>
    %322 = arith.subf %319, %321 : vector<8x128xf32>
    %323 = arith.addf %303, %322 : vector<8x128xf32>
    %324 = vector.broadcast %311 : vector<1x128xf32> to vector<8x128xf32>
    %325 = arith.mulf %324, %317 : vector<8x128xf32>
    %326 = vector.broadcast %313 : vector<1x128xf32> to vector<8x128xf32>
    %327 = arith.mulf %326, %315 : vector<8x128xf32>
    %328 = arith.addf %325, %327 : vector<8x128xf32>
    %329 = arith.addf %309, %328 : vector<8x128xf32>
    %330 = arith.extui %0 : i1 to i32
    %c0_i32_317 = arith.constant 0 : i32
    %331 = arith.cmpi ne, %330, %c0_i32_317 : i32
    scf.if %331 {
      %c0_320 = arith.constant 0 : index
      %c0_321 = arith.constant 0 : index
      %c1_322 = arith.constant 1 : index
      %c0_323 = arith.constant 0 : index
      %c0_324 = arith.constant 0 : index
      %335 = vector.load %arg5[%c0_320, %c0_321, %c1_322, %c0_323, %c0_324] : memref<1x2x2x8x128xf32, #tpu.memory_space<vmem>>, vector<1x1x1x8x128xf32>
      %336 = vector.shape_cast %335 : vector<1x1x1x8x128xf32> to vector<8x128xf32>
      %337 = vector.shape_cast %323 : vector<8x128xf32> to vector<1x1x1x8x128xf32>
      tpu.vector_store %arg5[%c0_320, %c0_321, %c1_322, %c0_323, %c0_324], %337 {strides = array<i32>} : memref<1x2x2x8x128xf32, #tpu.memory_space<vmem>>, vector<1x1x1x8x128xf32>,
      %c0_325 = arith.constant 0 : index
      %c1_326 = arith.constant 1 : index
      %c1_327 = arith.constant 1 : index
      %c0_328 = arith.constant 0 : index
      %c0_329 = arith.constant 0 : index
      %338 = vector.load %arg5[%c0_325, %c1_326, %c1_327, %c0_328, %c0_329] : memref<1x2x2x8x128xf32, #tpu.memory_space<vmem>>, vector<1x1x1x8x128xf32>
      %339 = vector.shape_cast %338 : vector<1x1x1x8x128xf32> to vector<8x128xf32>
      %340 = vector.shape_cast %329 : vector<8x128xf32> to vector<1x1x1x8x128xf32>
      tpu.vector_store %arg5[%c0_325, %c1_326, %c1_327, %c0_328, %c0_329], %340 {strides = array<i32>} : memref<1x2x2x8x128xf32, #tpu.memory_space<vmem>>, vector<1x1x1x8x128xf32>,
    } else {
    }
    %true_318 = arith.constant true
    %332 = arith.xori %0, %true_318 : i1
    %333 = arith.extui %332 : i1 to i32
    %c0_i32_319 = arith.constant 0 : i32
    %334 = arith.cmpi ne, %333, %c0_i32_319 : i32
    scf.if %334 {
      %c0_320 = arith.constant 0 : index
      %c0_321 = arith.constant 0 : index
      %c1_322 = arith.constant 1 : index
      %c0_323 = arith.constant 0 : index
      %c0_324 = arith.constant 0 : index
      %335 = vector.load %arg5[%c0_320, %c0_321, %c1_322, %c0_323, %c0_324] : memref<1x2x2x8x128xf32, #tpu.memory_space<vmem>>, vector<1x1x1x8x128xf32>
      %336 = vector.shape_cast %335 : vector<1x1x1x8x128xf32> to vector<8x128xf32>
      %337 = arith.addf %336, %323 : vector<8x128xf32>
      %c0_325 = arith.constant 0 : index
      %c0_326 = arith.constant 0 : index
      %c1_327 = arith.constant 1 : index
      %c0_328 = arith.constant 0 : index
      %c0_329 = arith.constant 0 : index
      %338 = vector.load %arg5[%c0_325, %c0_326, %c1_327, %c0_328, %c0_329] : memref<1x2x2x8x128xf32, #tpu.memory_space<vmem>>, vector<1x1x1x8x128xf32>
      %339 = vector.shape_cast %338 : vector<1x1x1x8x128xf32> to vector<8x128xf32>
      %340 = vector.shape_cast %337 : vector<8x128xf32> to vector<1x1x1x8x128xf32>
      tpu.vector_store %arg5[%c0_325, %c0_326, %c1_327, %c0_328, %c0_329], %340 {strides = array<i32>} : memref<1x2x2x8x128xf32, #tpu.memory_space<vmem>>, vector<1x1x1x8x128xf32>,
      %c0_330 = arith.constant 0 : index
      %c1_331 = arith.constant 1 : index
      %c1_332 = arith.constant 1 : index
      %c0_333 = arith.constant 0 : index
      %c0_334 = arith.constant 0 : index
      %341 = vector.load %arg5[%c0_330, %c1_331, %c1_332, %c0_333, %c0_334] : memref<1x2x2x8x128xf32, #tpu.memory_space<vmem>>, vector<1x1x1x8x128xf32>
      %342 = vector.shape_cast %341 : vector<1x1x1x8x128xf32> to vector<8x128xf32>
      %343 = arith.addf %342, %329 : vector<8x128xf32>
      %c0_335 = arith.constant 0 : index
      %c1_336 = arith.constant 1 : index
      %c1_337 = arith.constant 1 : index
      %c0_338 = arith.constant 0 : index
      %c0_339 = arith.constant 0 : index
      %344 = vector.load %arg5[%c0_335, %c1_336, %c1_337, %c0_338, %c0_339] : memref<1x2x2x8x128xf32, #tpu.memory_space<vmem>>, vector<1x1x1x8x128xf32>
      %345 = vector.shape_cast %344 : vector<1x1x1x8x128xf32> to vector<8x128xf32>
      %346 = vector.shape_cast %343 : vector<8x128xf32> to vector<1x1x1x8x128xf32>
      tpu.vector_store %arg5[%c0_335, %c1_336, %c1_337, %c0_338, %c0_339], %346 {strides = array<i32>} : memref<1x2x2x8x128xf32, #tpu.memory_space<vmem>>, vector<1x1x1x8x128xf32>,
    } else {
    }
    return
  }
  func.func @transform_0(%arg0: i32, %arg1: i32, %arg2: i32) -> (i32, i32, i32, i32, i32) {
    %c0_i32 = arith.constant 0 : i32
    %c0_i32_0 = arith.constant 0 : i32
    %c0_i32_1 = arith.constant 0 : i32
    return %arg0, %c0_i32, %c0_i32_0, %arg2, %arg1 : i32, i32, i32, i32, i32
  }
  func.func @transform_1(%arg0: i32, %arg1: i32, %arg2: i32) -> (i32, i32, i32, i32, i32) {
    %c0_i32 = arith.constant 0 : i32
    %c0_i32_0 = arith.constant 0 : i32
    %c0_i32_1 = arith.constant 0 : i32
    return %arg0, %c0_i32, %arg2, %c0_i32_0, %arg1 : i32, i32, i32, i32, i32
  }
  func.func @transform_2(%arg0: i32, %arg1: i32, %arg2: i32) -> (i32, i32, i32, i32, i32) {
    %c0_i32 = arith.constant 0 : i32
    %c0_i32_0 = arith.constant 0 : i32
    %c0_i32_1 = arith.constant 0 : i32
    %c0_i32_2 = arith.constant 0 : i32
    return %arg0, %c0_i32, %c0_i32_0, %c0_i32_1, %arg1 : i32, i32, i32, i32, i32
  }
}

</mosaic_0001>

<llo_original>
// kernel: _spectral_conv3d_forward.1
$region0: #{_spectral_conv3d_forward.1}
  #allocation0 [shape = 'u32[]', space=smem, size = 0x4, offset = 0x4, fixed_abs, tag = 'smem constant byte address 0x4 - core index']
  #allocation1 [shape = 'u32[144,128]{1,0:T(1,128)}', space=vmem, size = 0x12000, scoped, tag = 'internal scratch']
  %s0 = inlined_call_operand.hbm [shape: f32[4,2,2,8,128], index: 0, kind: input, shape index: {}]
  %s1 = inlined_call_operand.hbm [shape: f32[4,2,8,8,128], index: 1, kind: input, shape index: {}]
  %s2 = inlined_call_operand.hbm [shape: f32[4,2,2,8,128], index: 2, kind: output, shape index: {}]
  %s3 = sld [smem:[#allocation0]]
  $region65: #{_spectral_conv3d_forward.1} parent=0
    _
  %s5 = ssub.s32 1, %s3
  %s6 = scalar_select 0, %s5, %s3
  $region1: #{_spectral_conv3d_forward.1} parent=0
    #allocation2 [shape = 'u8[32768]{0}', space=vmem, size = 0x8000, scoped, tag = 'input window, operand 0']
    #allocation3 [shape = 's32[2]{0}', space=sflag, size = 0x8, scoped, tag = 'scoped memory for _spectral_conv3d_forward.1']
    #allocation4 [shape = 's32[2]{0}', space=sflag, size = 0x8, scoped, tag = 'scoped memory for _spectral_conv3d_forward.1']
    #allocation5 [shape = 'u8[131072]{0}', space=vmem, size = 0x20000, scoped, tag = 'input window, operand 1']
    #allocation6 [shape = 's32[2]{0}', space=sflag, size = 0x8, scoped, tag = 'scoped memory for _spectral_conv3d_forward.1']
    #allocation7 [shape = 'u8[32768]{0}', space=vmem, size = 0x8000, scoped, tag = 'output window, operand 0']
    %7 = vsyncpa [#allocation3], 0
    %s8 = scalar_lea.sflag [#allocation3], 1
    %9 = vsyncpa %s8, 0
    %10 = vsyncpa [#allocation6], 0
    %s11 = scalar_lea.sflag [#allocation6], 1
    %12 = vsyncpa %s11, 0
    %13 = vsyncpa [#allocation4], 0
    %s14 = scalar_lea.sflag [#allocation4], 1
    %15 = vsyncpa %s14, 0
    loop: start=0, step=1, limit=6
    $region2: #{_spectral_conv3d_forward.1} parent=1 // loop_pre_header
      _
    $region3: #{_spectral_conv3d_forward.1} parent=1 // loop_header
      %s17 = sphi 0, %s21
      %p18 = scmp.ge.s32.totalorder %s17, 6
      %s24 = sphi 0, %s43
      %s25 = sphi 0, %s39
      %s26 = sphi 0, %s35
      %s27 = sphi 0, %s24
      %s28 = sphi 0, %s25
      %s29 = sphi 0, %s26
      %s30 = sphi 0, %s27
      %s31 = sphi 0, %s28
      %s32 = sphi 0, %s29
      %s50 = sphi 0, %s52
      %s53 = sphi 0, %s50
      %s54 = sphi 0, %s53
      %s70 = sphi 0, %s54
      %s80 = sphi 0, %s82
      %s83 = sphi 0, %s80
      %s84 = sphi 0, %s83
      %s100 = sphi 0, %s84
      %s108 = sphi 0, %s110
      %s111 = sphi 0, %s108
      %s112 = sphi 0, %s111
      %s128 = sphi 0, %s112
    $region4: #{_spectral_conv3d_forward.1} parent=1 // loop_header_branch
      %20 = sbr.rel (%p18) target = $region8
    $region5: #{_spectral_conv3d_forward.1} parent=1 // loop_body
      %s22 = ssub.s32 %s17, 1
      %s23 = ssub.s32 %s17, 2
      %s33 = sadd.s32 1, %s26
      %p34 = scmp.ge.s32.totalorder %s33, 1
      %s35 = scalar_select %p34, 0, %s33
      %s36 = sadd.s32 1, %s25
      %s37 = scalar_select %p34, %s36, %s25
      %p38 = scmp.ge.s32.totalorder %s37, 1
      %s39 = scalar_select %p38, 0, %s37
      %s40 = sadd.s32 1, %s24
      %s41 = scalar_select %p38, %s40, %s24
      %p42 = scmp.ge.s32.totalorder %s41, 4
      %s43 = scalar_select %p42, 0, %s41
      %s44 = ssub.s32 %s24, %s43
      %s45 = ssub.s32 %s26, %s35
      %s46 = sor.u32 %s44, %s45
      %s47 = ssub.s32 %s25, %s39
      %s48 = sor.u32 %s46, %s47
      %p49 = scmp.eq.s32.totalorder %s48, 0
      %s51 = sadd.s32 %s50, 1
      %s52 = scalar_select %p49, %s50, %s51
      %p55 = pneg %p49
      %p56 = scmp.eq.s32.totalorder %s17, 3
      %p57 = por %p55, %p56
      %p58 = scmp.ne.s32.totalorder %s50, %s53
      %p59 = scmp.eq.s32.totalorder %s17, 0
      %p60 = por %p58, %p59
      %p61 = scmp.ne.s32.totalorder %s50, %s53
      %p62 = scmp.eq.s32.totalorder %s22, 3
      %p63 = por %p61, %p62
      %p64 = scmp.ne.s32.totalorder %s53, %s54
      %p65 = scmp.eq.s32.totalorder %s22, 0
      %p66 = por %p64, %p65
      %p67 = scmp.ne.s32.totalorder %s53, %s54
      %p68 = scmp.eq.s32.totalorder %s23, 3
      %p69 = por %p67, %p68
      %p71 = scmp.ne.s32.totalorder %s54, %s70
      %p72 = scmp.eq.s32.totalorder %s23, 0
      %p73 = por %p71, %p72
      %s74 = ssub.s32 %s24, %s43
      %s75 = ssub.s32 %s26, %s35
      %s76 = sor.u32 %s74, %s75
      %s77 = ssub.s32 %s25, %s39
      %s78 = sor.u32 %s76, %s77
      %p79 = scmp.eq.s32.totalorder %s78, 0
      %s81 = sadd.s32 %s80, 1
      %s82 = scalar_select %p79, %s80, %s81
      %p85 = pneg %p79
      %p86 = scmp.eq.s32.totalorder %s17, 3
      %p87 = por %p85, %p86
      %p88 = scmp.ne.s32.totalorder %s80, %s83
      %p89 = scmp.eq.s32.totalorder %s17, 0
      %p90 = por %p88, %p89
      %p91 = scmp.ne.s32.totalorder %s80, %s83
      %p92 = scmp.eq.s32.totalorder %s22, 3
      %p93 = por %p91, %p92
      %p94 = scmp.ne.s32.totalorder %s83, %s84
      %p95 = scmp.eq.s32.totalorder %s22, 0
      %p96 = por %p94, %p95
      %p97 = scmp.ne.s32.totalorder %s83, %s84
      %p98 = scmp.eq.s32.totalorder %s23, 3
      %p99 = por %p97, %p98
      %p101 = scmp.ne.s32.totalorder %s84, %s100
      %p102 = scmp.eq.s32.totalorder %s23, 0
      %p103 = por %p101, %p102
      %s104 = ssub.s32 %s24, %s43
      %s105 = ssub.s32 %s25, %s39
      %s106 = sor.u32 %s104, %s105
      %p107 = scmp.eq.s32.totalorder %s106, 0
      %s109 = sadd.s32 %s108, 1
      %s110 = scalar_select %p107, %s108, %s109
      %p113 = pneg %p107
      %p114 = scmp.eq.s32.totalorder %s17, 3
      %p115 = por %p113, %p114
      %p116 = scmp.ne.s32.totalorder %s108, %s111
      %p117 = scmp.eq.s32.totalorder %s17, 0
      %p118 = por %p116, %p117
      %p119 = scmp.ne.s32.totalorder %s108, %s111
      %p120 = scmp.eq.s32.totalorder %s22, 3
      %p121 = por %p119, %p120
      %p122 = scmp.ne.s32.totalorder %s111, %s112
      %p123 = scmp.eq.s32.totalorder %s22, 0
      %p124 = por %p122, %p123
      %p125 = scmp.ne.s32.totalorder %s111, %s112
      %p126 = scmp.eq.s32.totalorder %s23, 3
      %p127 = por %p125, %p126
      %p129 = scmp.ne.s32.totalorder %s112, %s128
      %p130 = scmp.eq.s32.totalorder %s23, 0
      %p131 = por %p129, %p130
      %p132 = scmp.le.s32.totalorder 1, %s17
      %p133 = scmp.lt.s32.totalorder %s17, 5
      %p134 = pnand %p132, %p133
      %p135 = pneg %p134
      // Predicated region
      $region9: #{_spectral_conv3d_forward.1} parent=5 // pred_check
        _
      $region10: #{_spectral_conv3d_forward.1} parent=5 // pred_check_branch
        %137 = sbr.rel (%p134) target = $region12
      $region11: #{_spectral_conv3d_forward.1} parent=5 // pred_region
        %s138 = ssub.s32 %s17, 1
      $region12: #{_spectral_conv3d_forward.1} parent=5 // pred_fallthru
        _
      %p139 = scmp.lt.s32.totalorder %s17, 4
      // Predicated region
      $region13: #{_spectral_conv3d_forward.1} parent=5 // pred_check
        %p140 = pneg %p139
      $region14: #{_spectral_conv3d_forward.1} parent=5 // pred_check_branch
        %142 = sbr.rel (%p140) target = $region16
      $region15: #{_spectral_conv3d_forward.1} parent=5 // pred_region
        // Predicated region
        $region17: #{_spectral_conv3d_forward.1} parent=15 // pred_check
          %p143 = pneg %p60
        $region18: #{_spectral_conv3d_forward.1} parent=15 // pred_check_branch
          %145 = sbr.rel (%p143) target = $region20
        $region19: #{_spectral_conv3d_forward.1} parent=15 // pred_region
          %s146 = sand.u32 %s50, 1
          %s147 = scalar_lea.sflag [#allocation3], %s146
          %s148 = sand.u32 %s50, 1
          %s149 = smul.addr %s148, 32
          %s150 = scalar_lea.vmem [#allocation2], %s149
          %s152 = ssub.s32 512, 512
          %153 = vsyncadd %s147, %s152
          %s154 = sadd.s32 %s25, %s26
          %s155 = smul.addr %s24, 4
          %s156 = sadd.s32 %s154, %s155
          %s157 = smul.addr %s156, 128
          %s158 = scalar_lea.hbm %s0, %s157
          %s159 = sshll.u32 %s150, 4
          %s160 = int_to_ptr.vmem [resolvable:$true] %s159
          %165 = dma.hbm_to_vmem [thread:$0]  %s158, 512, %s160, %s147, 128, 128, 8
        $region20: #{_spectral_conv3d_forward.1} parent=15 // pred_fallthru
          _
        // Predicated region
        $region21: #{_spectral_conv3d_forward.1} parent=15 // pred_check
          %p166 = pneg %p90
        $region22: #{_spectral_conv3d_forward.1} parent=15 // pred_check_branch
          %168 = sbr.rel (%p166) target = $region24
        $region23: #{_spectral_conv3d_forward.1} parent=15 // pred_region
          %s169 = sand.u32 %s80, 1
          %s170 = scalar_lea.sflag [#allocation6], %s169
          %s171 = sand.u32 %s80, 1
          %s172 = smul.addr %s171, 128
          %s173 = scalar_lea.vmem [#allocation5], %s172
          %s174 = smul.u32 8, %s26
          %s176 = ssub.s32 2048, 2048
          %177 = vsyncadd %s170, %s176
          %s178 = sadd.s32 %s25, %s174
          %s179 = smul.addr %s24, 16
          %s180 = sadd.s32 %s178, %s179
          %s181 = smul.addr %s180, 128
          %s182 = scalar_lea.hbm %s1, %s181
          %s183 = sshll.u32 %s173, 4
          %s184 = int_to_ptr.vmem [resolvable:$true] %s183
          %189 = dma.hbm_to_vmem [thread:$0]  %s182, 2048, %s184, %s170, 128, 128, 8
        $region24: #{_spectral_conv3d_forward.1} parent=15 // pred_fallthru
          _
      $region16: #{_spectral_conv3d_forward.1} parent=5 // pred_fallthru
        _
      %p190 = scmp.le.s32.totalorder 1, %s17
      %p191 = scmp.lt.s32.totalorder %s17, 5
      %p192 = pnand %p190, %p191
      %p193 = pneg %p192
      // Predicated region
      $region25: #{_spectral_conv3d_forward.1} parent=5 // pred_check
        _
      $region26: #{_spectral_conv3d_forward.1} parent=5 // pred_check_branch
        %195 = sbr.rel (%p192) target = $region28
      $region27: #{_spectral_conv3d_forward.1} parent=5 // pred_region
        %s196 = ssub.s32 %s17, 1
        %s197 = sand.u32 %s53, 1
        %s198 = scalar_lea.sflag [#allocation3], %s197
        %s199 = sand.u32 %s53, 1
        %s200 = smul.addr %s199, 32
        %s201 = scalar_lea.vmem [#allocation2], %s200
        // Predicated region
        $region29: #{_spectral_conv3d_forward.1} parent=27 // pred_check
          %p202 = pneg %p66
        $region30: #{_spectral_conv3d_forward.1} parent=27 // pred_check_branch
          %204 = sbr.rel (%p202) target = $region32
        $region31: #{_spectral_conv3d_forward.1} parent=27 // pred_region
          %205 = dma.done %s198, 512
        $region32: #{_spectral_conv3d_forward.1} parent=27 // pred_fallthru
          _
        %s206 = sand.u32 %s83, 1
        %s207 = scalar_lea.sflag [#allocation6], %s206
        %s208 = sand.u32 %s83, 1
        %s209 = smul.addr %s208, 128
        %s210 = scalar_lea.vmem [#allocation5], %s209
        // Predicated region
        $region33: #{_spectral_conv3d_forward.1} parent=27 // pred_check
          %p211 = pneg %p96
        $region34: #{_spectral_conv3d_forward.1} parent=27 // pred_check_branch
          %213 = sbr.rel (%p211) target = $region36
        $region35: #{_spectral_conv3d_forward.1} parent=27 // pred_region
          %214 = dma.done %s207, 2048
        $region36: #{_spectral_conv3d_forward.1} parent=27 // pred_fallthru
          _
        %s215 = sand.u32 %s53, 1
        %s216 = scalar_lea.sflag [#allocation3], %s215
        %s217 = sand.u32 %s53, 1
        %s218 = smul.addr %s217, 32
        %s219 = scalar_lea.vmem [#allocation2], %s218
        %p220 = pneg %p66
        %p221 = pneg %p63
        %s222 = sand.u32 %s83, 1
        %s223 = scalar_lea.sflag [#allocation6], %s222
        %s224 = sand.u32 %s83, 1
        %s225 = smul.addr %s224, 128
        %s226 = scalar_lea.vmem [#allocation5], %s225
        %p227 = pneg %p96
        %p228 = pneg %p93
        %p229 = pneg %p124
        %p230 = pneg %p121
        %s231 = sand.u32 %s111, 1
        %s232 = scalar_lea.sflag [#allocation4], %s231
        %s233 = sand.u32 %s111, 1
        %s234 = smul.addr %s233, 32
        %s235 = scalar_lea.vmem [#allocation7], %s234
        %s236 = smul.u32 8, %s29
        %p237 = scmp.eq.s32.totalorder %s29, 0
        %v238 = vld [vmem:[%s201] sm:$0x1]
        %s239 = scalar_lea.vmem %s201, 16 [#allocation2]
        %v240 = vld [vmem:[%s239] sm:$0x1]
        %v241 = vld [vmem:[%s210] sm:$0xff]
        %s242 = scalar_lea.vmem %s210, 64 [#allocation5]
        %v243 = vld [vmem:[%s242] sm:$0xff]
        %v244 = vlaneseq
        %v245 = vshrl.u32 %v244, 7
        %v246 = vsub.s32 0, %v245
        %v247 = vrot.slane %v238, %v246
        %v248 = vmul.f32 %v247, %v241
        %v249 = vlaneseq
        %v250 = vshrl.u32 %v249, 7
        %v251 = vsub.s32 0, %v250
        %v252 = vrot.slane %v240, %v251
        %v253 = vmul.f32 %v252, %v243
        %v254 = vsub.f32 %v248, %v253
        %v255 = vadd.f32 %v254, 0.0
        %v256 = vmul.f32 %v247, %v243
        %v257 = vmul.f32 %v252, %v241
        %v258 = vadd.f32 %v256, %v257
        %v259 = vadd.f32 %v258, 0.0
        %v260 = vld [vmem:[%s201 + $0x1] sm:$0x1]
        %v261 = vld [vmem:[%s239 + $0x1] sm:$0x1]
        %s262 = scalar_lea.vmem %s210, 8 [#allocation5]
        %v263 = vld [vmem:[%s262] sm:$0xff]
        %s264 = scalar_lea.vmem %s210, 72 [#allocation5]
        %v265 = vld [vmem:[%s264] sm:$0xff]
        %v266 = vlaneseq
        %v267 = vshrl.u32 %v266, 7
        %v268 = vsub.s32 0, %v267
        %v269 = vrot.slane %v260, %v268
        %v270 = vmul.f32 %v269, %v263
        %v271 = vlaneseq
        %v272 = vshrl.u32 %v271, 7
        %v273 = vsub.s32 0, %v272
        %v274 = vrot.slane %v261, %v273
        %v275 = vmul.f32 %v274, %v265
        %v276 = vsub.f32 %v270, %v275
        %v277 = vadd.f32 %v255, %v276
        %v278 = vmul.f32 %v269, %v265
        %v279 = vmul.f32 %v274, %v263
        %v280 = vadd.f32 %v278, %v279
        %v281 = vadd.f32 %v259, %v280
        %v282 = vld [vmem:[%s201 + $0x2] sm:$0x1]
        %v283 = vld [vmem:[%s239 + $0x2] sm:$0x1]
        %s284 = scalar_lea.vmem %s210, 16 [#allocation5]
        %v285 = vld [vmem:[%s284] sm:$0xff]
        %s286 = scalar_lea.vmem %s210, 80 [#allocation5]
        %v287 = vld [vmem:[%s286] sm:$0xff]
        %v288 = vlaneseq
        %v289 = vshrl.u32 %v288, 7
        %v290 = vsub.s32 0, %v289
        %v291 = vrot.slane %v282, %v290
        %v292 = vmul.f32 %v291, %v285
        %v293 = vlaneseq
        %v294 = vshrl.u32 %v293, 7
        %v295 = vsub.s32 0, %v294
        %v296 = vrot.slane %v283, %v295
        %v297 = vmul.f32 %v296, %v287
        %v298 = vsub.f32 %v292, %v297
        %v299 = vadd.f32 %v277, %v298
        %v300 = vmul.f32 %v291, %v287
        %v301 = vmul.f32 %v296, %v285
        %v302 = vadd.f32 %v300, %v301
        %v303 = vadd.f32 %v281, %v302
        %v304 = vld [vmem:[%s201 + $0x3] sm:$0x1]
        %v305 = vld [vmem:[%s239 + $0x3] sm:$0x1]
        %s306 = scalar_lea.vmem %s210, 24 [#allocation5]
        %v307 = vld [vmem:[%s306] sm:$0xff]
        %s308 = scalar_lea.vmem %s210, 88 [#allocation5]
        %v309 = vld [vmem:[%s308] sm:$0xff]
        %v310 = vlaneseq
        %v311 = vshrl.u32 %v310, 7
        %v312 = vsub.s32 0, %v311
        %v313 = vrot.slane %v304, %v312
        %v314 = vmul.f32 %v313, %v307
        %v315 = vlaneseq
        %v316 = vshrl.u32 %v315, 7
        %v317 = vsub.s32 0, %v316
        %v318 = vrot.slane %v305, %v317
        %v319 = vmul.f32 %v318, %v309
        %v320 = vsub.f32 %v314, %v319
        %v321 = vadd.f32 %v299, %v320
        %v322 = vmul.f32 %v313, %v309
        %v323 = vmul.f32 %v318, %v307
        %v324 = vadd.f32 %v322, %v323
        %v325 = vadd.f32 %v303, %v324
        %v326 = vld [vmem:[%s201 + $0x4] sm:$0x1]
        %v327 = vld [vmem:[%s239 + $0x4] sm:$0x1]
        %s328 = scalar_lea.vmem %s210, 32 [#allocation5]
        %v329 = vld [vmem:[%s328] sm:$0xff]
        %s330 = scalar_lea.vmem %s210, 96 [#allocation5]
        %v331 = vld [vmem:[%s330] sm:$0xff]
        %v332 = vlaneseq
        %v333 = vshrl.u32 %v332, 7
        %v334 = vsub.s32 0, %v333
        %v335 = vrot.slane %v326, %v334
        %v336 = vmul.f32 %v335, %v329
        %v337 = vlaneseq
        %v338 = vshrl.u32 %v337, 7
        %v339 = vsub.s32 0, %v338
        %v340 = vrot.slane %v327, %v339
        %v341 = vmul.f32 %v340, %v331
        %v342 = vsub.f32 %v336, %v341
        %v343 = vadd.f32 %v321, %v342
        %v344 = vmul.f32 %v335, %v331
        %v345 = vmul.f32 %v340, %v329
        %v346 = vadd.f32 %v344, %v345
        %v347 = vadd.f32 %v325, %v346
        %v348 = vld [vmem:[%s201 + $0x5] sm:$0x1]
        %v349 = vld [vmem:[%s239 + $0x5] sm:$0x1]
        %s350 = scalar_lea.vmem %s210, 40 [#allocation5]
        %v351 = vld [vmem:[%s350] sm:$0xff]
        %s352 = scalar_lea.vmem %s210, 104 [#allocation5]
        %v353 = vld [vmem:[%s352] sm:$0xff]
        %v354 = vlaneseq
        %v355 = vshrl.u32 %v354, 7
        %v356 = vsub.s32 0, %v355
        %v357 = vrot.slane %v348, %v356
        %v358 = vmul.f32 %v357, %v351
        %v359 = vlaneseq
        %v360 = vshrl.u32 %v359, 7
        %v361 = vsub.s32 0, %v360
        %v362 = vrot.slane %v349, %v361
        %v363 = vmul.f32 %v362, %v353
        %v364 = vsub.f32 %v358, %v363
        %v365 = vadd.f32 %v343, %v364
        %v366 = vmul.f32 %v357, %v353
        %v367 = vmul.f32 %v362, %v351
        %v368 = vadd.f32 %v366, %v367
        %v369 = vadd.f32 %v347, %v368
        %v370 = vld [vmem:[%s201 + $0x6] sm:$0x1]
        %v371 = vld [vmem:[%s239 + $0x6] sm:$0x1]
        %s372 = scalar_lea.vmem %s210, 48 [#allocation5]
        %v373 = vld [vmem:[%s372] sm:$0xff]
        %s374 = scalar_lea.vmem %s210, 112 [#allocation5]
        %v375 = vld [vmem:[%s374] sm:$0xff]
        %v376 = vlaneseq
        %v377 = vshrl.u32 %v376, 7
        %v378 = vsub.s32 0, %v377
        %v379 = vrot.slane %v370, %v378
        %v380 = vmul.f32 %v379, %v373
        %v381 = vlaneseq
        %v382 = vshrl.u32 %v381, 7
        %v383 = vsub.s32 0, %v382
        %v384 = vrot.slane %v371, %v383
        %v385 = vmul.f32 %v384, %v375
        %v386 = vsub.f32 %v380, %v385
        %v387 = vadd.f32 %v365, %v386
        %v388 = vmul.f32 %v379, %v375
        %v389 = vmul.f32 %v384, %v373
        %v390 = vadd.f32 %v388, %v389
        %v391 = vadd.f32 %v369, %v390
        %v392 = vld [vmem:[%s201 + $0x7] sm:$0x1]
        %v393 = vld [vmem:[%s239 + $0x7] sm:$0x1]
        %s394 = scalar_lea.vmem %s210, 56 [#allocation5]
        %v395 = vld [vmem:[%s394] sm:$0xff]
        %s396 = scalar_lea.vmem %s210, 120 [#allocation5]
        %v397 = vld [vmem:[%s396] sm:$0xff]
        %v398 = vlaneseq
        %v399 = vshrl.u32 %v398, 7
        %v400 = vsub.s32 0, %v399
        %v401 = vrot.slane %v392, %v400
        %v402 = vmul.f32 %v401, %v395
        %v403 = vlaneseq
        %v404 = vshrl.u32 %v403, 7
        %v405 = vsub.s32 0, %v404
        %v406 = vrot.slane %v393, %v405
        %v407 = vmul.f32 %v406, %v397
        %v408 = vsub.f32 %v402, %v407
        %v409 = vadd.f32 %v387, %v408
        %v410 = vmul.f32 %v401, %v397
        %v411 = vmul.f32 %v406, %v395
        %v412 = vadd.f32 %v410, %v411
        %v413 = vadd.f32 %v391, %v412
        // Predicated region
        $region37: #{_spectral_conv3d_forward.1} parent=27 // pred_check
          %p414 = pneg %p237
        $region38: #{_spectral_conv3d_forward.1} parent=27 // pred_check_branch
          %416 = sbr.rel (%p414) target = $region40
        $region39: #{_spectral_conv3d_forward.1} parent=27 // pred_region
          %417 = vst [vmem:[%s235] sm:$0xff] %v409
          %s418 = scalar_lea.vmem %s235, 16 [#allocation7]
          %419 = vst [vmem:[%s418] sm:$0xff] %v413
        $region40: #{_spectral_conv3d_forward.1} parent=27 // pred_fallthru
          _
        %p420 = scmp.ne.s32.totalorder %s29, 0
        // Predicated region
        $region41: #{_spectral_conv3d_forward.1} parent=27 // pred_check
          %p421 = pneg %p420
        $region42: #{_spectral_conv3d_forward.1} parent=27 // pred_check_branch
          %423 = sbr.rel (%p421) target = $region44
        $region43: #{_spectral_conv3d_forward.1} parent=27 // pred_region
          %v424 = vld [vmem:[%s235] sm:$0xff]
          %v425 = vadd.f32 %v424, %v409
          %426 = vst [vmem:[%s235] sm:$0xff] %v425
          %s427 = scalar_lea.vmem %s235, 16 [#allocation7]
          %v428 = vld [vmem:[%s427] sm:$0xff]
          %v429 = vadd.f32 %v428, %v413
          %430 = vst [vmem:[%s427] sm:$0xff] %v429
        $region44: #{_spectral_conv3d_forward.1} parent=27 // pred_fallthru
          _
        %s431 = scalar_lea.vmem %s201, 8 [#allocation2]
        %v432 = vld [vmem:[%s431] sm:$0x1]
        %s433 = scalar_lea.vmem %s201, 24 [#allocation2]
        %v434 = vld [vmem:[%s433] sm:$0x1]
        %v435 = vld [vmem:[%s210] sm:$0xff]
        %v436 = vld [vmem:[%s242] sm:$0xff]
        %v437 = vlaneseq
        %v438 = vshrl.u32 %v437, 7
        %v439 = vsub.s32 0, %v438
        %v440 = vrot.slane %v432, %v439
        %v441 = vmul.f32 %v440, %v435
        %v442 = vlaneseq
        %v443 = vshrl.u32 %v442, 7
        %v444 = vsub.s32 0, %v443
        %v445 = vrot.slane %v434, %v444
        %v446 = vmul.f32 %v445, %v436
        %v447 = vsub.f32 %v441, %v446
        %v448 = vadd.f32 %v447, 0.0
        %v449 = vmul.f32 %v440, %v436
        %v450 = vmul.f32 %v445, %v435
        %v451 = vadd.f32 %v449, %v450
        %v452 = vadd.f32 %v451, 0.0
        %v453 = vld [vmem:[%s431 + $0x1] sm:$0x1]
        %v454 = vld [vmem:[%s433 + $0x1] sm:$0x1]
        %v455 = vld [vmem:[%s262] sm:$0xff]
        %v456 = vld [vmem:[%s264] sm:$0xff]
        %v457 = vlaneseq
        %v458 = vshrl.u32 %v457, 7
        %v459 = vsub.s32 0, %v458
        %v460 = vrot.slane %v453, %v459
        %v461 = vmul.f32 %v460, %v455
        %v462 = vlaneseq
        %v463 = vshrl.u32 %v462, 7
        %v464 = vsub.s32 0, %v463
        %v465 = vrot.slane %v454, %v464
        %v466 = vmul.f32 %v465, %v456
        %v467 = vsub.f32 %v461, %v466
        %v468 = vadd.f32 %v448, %v467
        %v469 = vmul.f32 %v460, %v456
        %v470 = vmul.f32 %v465, %v455
        %v471 = vadd.f32 %v469, %v470
        %v472 = vadd.f32 %v452, %v471
        %v473 = vld [vmem:[%s431 + $0x2] sm:$0x1]
        %v474 = vld [vmem:[%s433 + $0x2] sm:$0x1]
        %v475 = vld [vmem:[%s284] sm:$0xff]
        %v476 = vld [vmem:[%s286] sm:$0xff]
        %v477 = vlaneseq
        %v478 = vshrl.u32 %v477, 7
        %v479 = vsub.s32 0, %v478
        %v480 = vrot.slane %v473, %v479
        %v481 = vmul.f32 %v480, %v475
        %v482 = vlaneseq
        %v483 = vshrl.u32 %v482, 7
        %v484 = vsub.s32 0, %v483
        %v485 = vrot.slane %v474, %v484
        %v486 = vmul.f32 %v485, %v476
        %v487 = vsub.f32 %v481, %v486
        %v488 = vadd.f32 %v468, %v487
        %v489 = vmul.f32 %v480, %v476
        %v490 = vmul.f32 %v485, %v475
        %v491 = vadd.f32 %v489, %v490
        %v492 = vadd.f32 %v472, %v491
        %v493 = vld [vmem:[%s431 + $0x3] sm:$0x1]
        %v494 = vld [vmem:[%s433 + $0x3] sm:$0x1]
        %v495 = vld [vmem:[%s306] sm:$0xff]
        %v496 = vld [vmem:[%s308] sm:$0xff]
        %v497 = vlaneseq
        %v498 = vshrl.u32 %v497, 7
        %v499 = vsub.s32 0, %v498
        %v500 = vrot.slane %v493, %v499
        %v501 = vmul.f32 %v500, %v495
        %v502 = vlaneseq
        %v503 = vshrl.u32 %v502, 7
        %v504 = vsub.s32 0, %v503
        %v505 = vrot.slane %v494, %v504
        %v506 = vmul.f32 %v505, %v496
        %v507 = vsub.f32 %v501, %v506
        %v508 = vadd.f32 %v488, %v507
        %v509 = vmul.f32 %v500, %v496
        %v510 = vmul.f32 %v505, %v495
        %v511 = vadd.f32 %v509, %v510
        %v512 = vadd.f32 %v492, %v511
        %v513 = vld [vmem:[%s431 + $0x4] sm:$0x1]
        %v514 = vld [vmem:[%s433 + $0x4] sm:$0x1]
        %v515 = vld [vmem:[%s328] sm:$0xff]
        %v516 = vld [vmem:[%s330] sm:$0xff]
        %v517 = vlaneseq
        %v518 = vshrl.u32 %v517, 7
        %v519 = vsub.s32 0, %v518
        %v520 = vrot.slane %v513, %v519
        %v521 = vmul.f32 %v520, %v515
        %v522 = vlaneseq
        %v523 = vshrl.u32 %v522, 7
        %v524 = vsub.s32 0, %v523
        %v525 = vrot.slane %v514, %v524
        %v526 = vmul.f32 %v525, %v516
        %v527 = vsub.f32 %v521, %v526
        %v528 = vadd.f32 %v508, %v527
        %v529 = vmul.f32 %v520, %v516
        %v530 = vmul.f32 %v525, %v515
        %v531 = vadd.f32 %v529, %v530
        %v532 = vadd.f32 %v512, %v531
        %v533 = vld [vmem:[%s431 + $0x5] sm:$0x1]
        %v534 = vld [vmem:[%s433 + $0x5] sm:$0x1]
        %v535 = vld [vmem:[%s350] sm:$0xff]
        %v536 = vld [vmem:[%s352] sm:$0xff]
        %v537 = vlaneseq
        %v538 = vshrl.u32 %v537, 7
        %v539 = vsub.s32 0, %v538
        %v540 = vrot.slane %v533, %v539
        %v541 = vmul.f32 %v540, %v535
        %v542 = vlaneseq
        %v543 = vshrl.u32 %v542, 7
        %v544 = vsub.s32 0, %v543
        %v545 = vrot.slane %v534, %v544
        %v546 = vmul.f32 %v545, %v536
        %v547 = vsub.f32 %v541, %v546
        %v548 = vadd.f32 %v528, %v547
        %v549 = vmul.f32 %v540, %v536
        %v550 = vmul.f32 %v545, %v535
        %v551 = vadd.f32 %v549, %v550
        %v552 = vadd.f32 %v532, %v551
        %v553 = vld [vmem:[%s431 + $0x6] sm:$0x1]
        %v554 = vld [vmem:[%s433 + $0x6] sm:$0x1]
        %v555 = vld [vmem:[%s372] sm:$0xff]
        %v556 = vld [vmem:[%s374] sm:$0xff]
        %v557 = vlaneseq
        %v558 = vshrl.u32 %v557, 7
        %v559 = vsub.s32 0, %v558
        %v560 = vrot.slane %v553, %v559
        %v561 = vmul.f32 %v560, %v555
        %v562 = vlaneseq
        %v563 = vshrl.u32 %v562, 7
        %v564 = vsub.s32 0, %v563
        %v565 = vrot.slane %v554, %v564
        %v566 = vmul.f32 %v565, %v556
        %v567 = vsub.f32 %v561, %v566
        %v568 = vadd.f32 %v548, %v567
        %v569 = vmul.f32 %v560, %v556
        %v570 = vmul.f32 %v565, %v555
        %v571 = vadd.f32 %v569, %v570
        %v572 = vadd.f32 %v552, %v571
        %v573 = vld [vmem:[%s431 + $0x7] sm:$0x1]
        %v574 = vld [vmem:[%s433 + $0x7] sm:$0x1]
        %v575 = vld [vmem:[%s394] sm:$0xff]
        %v576 = vld [vmem:[%s396] sm:$0xff]
        %v577 = vlaneseq
        %v578 = vshrl.u32 %v577, 7
        %v579 = vsub.s32 0, %v578
        %v580 = vrot.slane %v573, %v579
        %v581 = vmul.f32 %v580, %v575
        %v582 = vlaneseq
        %v583 = vshrl.u32 %v582, 7
        %v584 = vsub.s32 0, %v583
        %v585 = vrot.slane %v574, %v584
        %v586 = vmul.f32 %v585, %v576
        %v587 = vsub.f32 %v581, %v586
        %v588 = vadd.f32 %v568, %v587
        %v589 = vmul.f32 %v580, %v576
        %v590 = vmul.f32 %v585, %v575
        %v591 = vadd.f32 %v589, %v590
        %v592 = vadd.f32 %v572, %v591
        // Predicated region
        $region45: #{_spectral_conv3d_forward.1} parent=27 // pred_check
          %p593 = pneg %p237
        $region46: #{_spectral_conv3d_forward.1} parent=27 // pred_check_branch
          %595 = sbr.rel (%p593) target = $region48
        $region47: #{_spectral_conv3d_forward.1} parent=27 // pred_region
          %s596 = scalar_lea.vmem %s235, 8 [#allocation7]
          %597 = vst [vmem:[%s596] sm:$0xff] %v588
          %s598 = scalar_lea.vmem %s235, 24 [#allocation7]
          %599 = vst [vmem:[%s598] sm:$0xff] %v592
        $region48: #{_spectral_conv3d_forward.1} parent=27 // pred_fallthru
          _
        // Predicated region
        $region49: #{_spectral_conv3d_forward.1} parent=27 // pred_check
          %p600 = pneg %p420
        $region50: #{_spectral_conv3d_forward.1} parent=27 // pred_check_branch
          %602 = sbr.rel (%p600) target = $region52
        $region51: #{_spectral_conv3d_forward.1} parent=27 // pred_region
          %s603 = scalar_lea.vmem %s235, 8 [#allocation7]
          %v604 = vld [vmem:[%s603] sm:$0xff]
          %v605 = vadd.f32 %v604, %v588
          %606 = vst [vmem:[%s603] sm:$0xff] %v605
          %s607 = scalar_lea.vmem %s235, 24 [#allocation7]
          %v608 = vld [vmem:[%s607] sm:$0xff]
          %v609 = vadd.f32 %v608, %v592
          %610 = vst [vmem:[%s607] sm:$0xff] %v609
        $region52: #{_spectral_conv3d_forward.1} parent=27 // pred_fallthru
          _
        %s611 = sand.u32 %s111, 1
        %s612 = scalar_lea.sflag [#allocation4], %s611
        %s613 = sand.u32 %s111, 1
        %s614 = smul.addr %s613, 32
        %s615 = scalar_lea.vmem [#allocation7], %s614
        // Predicated region
        $region53: #{_spectral_conv3d_forward.1} parent=27 // pred_check
          %p616 = pneg %p121
        $region54: #{_spectral_conv3d_forward.1} parent=27 // pred_check_branch
          %618 = sbr.rel (%p616) target = $region56
        $region55: #{_spectral_conv3d_forward.1} parent=27 // pred_region
          %s620 = ssub.s32 512, 512
          %621 = vsyncadd %s612, %s620
          %s622 = smul.addr %s27, 4
          %s623 = sadd.s32 %s28, %s622
          %s624 = smul.addr %s623, 128
          %s625 = scalar_lea.hbm %s2, %s624
          %s626 = sshll.u32 %s615, 4
          %s627 = int_to_ptr.vmem [resolvable:$true] %s626
          %632 = dma.vmem_to_hbm [thread:$0]  %s627, 512, %s625, %s612, 128, 128, 8
        $region56: #{_spectral_conv3d_forward.1} parent=27 // pred_fallthru
          _
      $region28: #{_spectral_conv3d_forward.1} parent=5 // pred_fallthru
        _
      %p633 = scmp.le.s32.totalorder 2, %s17
      // Predicated region
      $region57: #{_spectral_conv3d_forward.1} parent=5 // pred_check
        %p634 = pneg %p633
      $region58: #{_spectral_conv3d_forward.1} parent=5 // pred_check_branch
        %636 = sbr.rel (%p634) target = $region60
      $region59: #{_spectral_conv3d_forward.1} parent=5 // pred_region
        %s637 = ssub.s32 %s17, 2
        // Predicated region
        $region61: #{_spectral_conv3d_forward.1} parent=59 // pred_check
          %p638 = pneg %p127
        $region62: #{_spectral_conv3d_forward.1} parent=59 // pred_check_branch
          %640 = sbr.rel (%p638) target = $region64
        $region63: #{_spectral_conv3d_forward.1} parent=59 // pred_region
          %s641 = sand.u32 %s112, 1
          %s642 = scalar_lea.sflag [#allocation4], %s641
          %s643 = sand.u32 %s112, 1
          %s644 = smul.addr %s643, 32
          %s645 = scalar_lea.vmem [#allocation7], %s644
          %646 = dma.done %s642, 512
        $region64: #{_spectral_conv3d_forward.1} parent=59 // pred_fallthru
          _
      $region60: #{_spectral_conv3d_forward.1} parent=5 // pred_fallthru
        _
    $region6: #{_spectral_conv3d_forward.1} parent=1 // loop_footer
      %s21 = sadd.s32 1, %s17
    $region7: #{_spectral_conv3d_forward.1} parent=1 // loop_footer_branch
      %16 = sbr.rel target = $region3
    $region8: #{_spectral_conv3d_forward.1} parent=1 // loop_exit
      _
    %647 = vsyncpa [#allocation3], 1
    %s648 = scalar_lea.sflag [#allocation3], 1
    %649 = vsyncpa %s648, 1
    %650 = vsyncpa [#allocation6], 1
    %s651 = scalar_lea.sflag [#allocation6], 1
    %652 = vsyncpa %s651, 1
    %653 = vsyncpa [#allocation4], 1
    %s654 = scalar_lea.sflag [#allocation4], 1
    %655 = vsyncpa %s654, 1

// kernel: reverse.1
$region0: #{reverse.1}
  #allocation0 [shape = 's32[1]{0}', space=sflag, size = 0x4, scoped, tag = 'scoped memory for reverse.1']
  %s0 = inlined_call_operand.vmem [shape: f32[2,4,16,16,7], index: 0, kind: input, shape index: {}]
  %s1 = inlined_call_operand.vmem [shape: f32[2,4,16,16,7], index: 1, kind: output, shape index: {}]
  %s2 = scalar_lea.vmem %s0, 96
  %v3 = vld [vmem:[%s2] sm:$0xff]
  %4 = vst [vmem:[%s1] sm:$0xff] %v3
  %s5 = scalar_lea.vmem %s0, 544
  %v6 = vld [vmem:[%s5] sm:$0xff]
  %s7 = scalar_lea.vmem %s1, 448
  %8 = vst [vmem:[%s7] sm:$0xff] %v6
  %s9 = scalar_lea.vmem %s0, 208
  %v10 = vld [vmem:[%s9] sm:$0xff]
  %s11 = scalar_lea.vmem %s1, 112
  %12 = vst [vmem:[%s11] sm:$0xff] %v10
  %s13 = scalar_lea.vmem %s0, 656
  %v14 = vld [vmem:[%s13] sm:$0xff]
  %s15 = scalar_lea.vmem %s1, 560
  %16 = vst [vmem:[%s15] sm:$0xff] %v14
  %s17 = scalar_lea.vmem %s0, 320
  %v18 = vld [vmem:[%s17] sm:$0xff]
  %s19 = scalar_lea.vmem %s1, 224
  %20 = vst [vmem:[%s19] sm:$0xff] %v18
  %s21 = scalar_lea.vmem %s0, 768
  %v22 = vld [vmem:[%s21] sm:$0xff]
  %s23 = scalar_lea.vmem %s1, 672
  %24 = vst [vmem:[%s23] sm:$0xff] %v22
  %s25 = scalar_lea.vmem %s0, 432
  %v26 = vld [vmem:[%s25] sm:$0xff]
  %s27 = scalar_lea.vmem %s1, 336
  %28 = vst [vmem:[%s27] sm:$0xff] %v26
  %s29 = scalar_lea.vmem %s0, 880
  %v30 = vld [vmem:[%s29] sm:$0xff]
  %s31 = scalar_lea.vmem %s1, 784
  %32 = vst [vmem:[%s31] sm:$0xff] %v30
  %s33 = scalar_lea.vmem %s0, 80
  %v34 = vld [vmem:[%s33] sm:$0xff]
  %s35 = scalar_lea.vmem %s1, 16
  %36 = vst [vmem:[%s35] sm:$0xff] %v34
  %s37 = scalar_lea.vmem %s0, 528
  %v38 = vld [vmem:[%s37] sm:$0xff]
  %s39 = scalar_lea.vmem %s1, 464
  %40 = vst [vmem:[%s39] sm:$0xff] %v38
  %s41 = scalar_lea.vmem %s0, 192
  %v42 = vld [vmem:[%s41] sm:$0xff]
  %s43 = scalar_lea.vmem %s1, 128
  %44 = vst [vmem:[%s43] sm:$0xff] %v42
  %s45 = scalar_lea.vmem %s0, 640
  %v46 = vld [vmem:[%s45] sm:$0xff]
  %s47 = scalar_lea.vmem %s1, 576
  %48 = vst [vmem:[%s47] sm:$0xff] %v46
  %s49 = scalar_lea.vmem %s0, 304
  %v50 = vld [vmem:[%s49] sm:$0xff]
  %s51 = scalar_lea.vmem %s1, 240
  %52 = vst [vmem:[%s51] sm:$0xff] %v50
  %s53 = scalar_lea.vmem %s0, 752
  %v54 = vld [vmem:[%s53] sm:$0xff]
  %s55 = scalar_lea.vmem %s1, 688
  %56 = vst [vmem:[%s55] sm:$0xff] %v54
  %s57 = scalar_lea.vmem %s0, 416
  %v58 = vld [vmem:[%s57] sm:$0xff]
  %s59 = scalar_lea.vmem %s1, 352
  %60 = vst [vmem:[%s59] sm:$0xff] %v58
  %s61 = scalar_lea.vmem %s0, 864
  %v62 = vld [vmem:[%s61] sm:$0xff]
  %s63 = scalar_lea.vmem %s1, 800
  %64 = vst [vmem:[%s63] sm:$0xff] %v62
  %s65 = scalar_lea.vmem %s0, 64
  %v66 = vld [vmem:[%s65] sm:$0xff]
  %s67 = scalar_lea.vmem %s1, 32
  %68 = vst [vmem:[%s67] sm:$0xff] %v66
  %s69 = scalar_lea.vmem %s0, 512
  %v70 = vld [vmem:[%s69] sm:$0xff]
  %s71 = scalar_lea.vmem %s1, 480
  %72 = vst [vmem:[%s71] sm:$0xff] %v70
  %s73 = scalar_lea.vmem %s0, 176
  %v74 = vld [vmem:[%s73] sm:$0xff]
  %s75 = scalar_lea.vmem %s1, 144
  %76 = vst [vmem:[%s75] sm:$0xff] %v74
  %s77 = scalar_lea.vmem %s0, 624
  %v78 = vld [vmem:[%s77] sm:$0xff]
  %s79 = scalar_lea.vmem %s1, 592
  %80 = vst [vmem:[%s79] sm:$0xff] %v78
  %s81 = scalar_lea.vmem %s0, 288
  %v82 = vld [vmem:[%s81] sm:$0xff]
  %s83 = scalar_lea.vmem %s1, 256
  %84 = vst [vmem:[%s83] sm:$0xff] %v82
  %s85 = scalar_lea.vmem %s0, 736
  %v86 = vld [vmem:[%s85] sm:$0xff]
  %s87 = scalar_lea.vmem %s1, 704
  %88 = vst [vmem:[%s87] sm:$0xff] %v86
  %s89 = scalar_lea.vmem %s0, 400
  %v90 = vld [vmem:[%s89] sm:$0xff]
  %s91 = scalar_lea.vmem %s1, 368
  %92 = vst [vmem:[%s91] sm:$0xff] %v90
  %s93 = scalar_lea.vmem %s0, 848
  %v94 = vld [vmem:[%s93] sm:$0xff]
  %s95 = scalar_lea.vmem %s1, 816
  %96 = vst [vmem:[%s95] sm:$0xff] %v94
  %s97 = scalar_lea.vmem %s0, 48
  %v98 = vld [vmem:[%s97] sm:$0xff]
  %s99 = scalar_lea.vmem %s1, 48
  %100 = vst [vmem:[%s99] sm:$0xff] %v98
  %s101 = scalar_lea.vmem %s0, 496
  %v102 = vld [vmem:[%s101] sm:$0xff]
  %s103 = scalar_lea.vmem %s1, 496
  %104 = vst [vmem:[%s103] sm:$0xff] %v102
  %s105 = scalar_lea.vmem %s0, 160
  %v106 = vld [vmem:[%s105] sm:$0xff]
  %s107 = scalar_lea.vmem %s1, 160
  %108 = vst [vmem:[%s107] sm:$0xff] %v106
  %s109 = scalar_lea.vmem %s0, 608
  %v110 = vld [vmem:[%s109] sm:$0xff]
  %s111 = scalar_lea.vmem %s1, 608
  %112 = vst [vmem:[%s111] sm:$0xff] %v110
  %s113 = scalar_lea.vmem %s0, 272
  %v114 = vld [vmem:[%s113] sm:$0xff]
  %s115 = scalar_lea.vmem %s1, 272
  %116 = vst [vmem:[%s115] sm:$0xff] %v114
  %s117 = scalar_lea.vmem %s0, 720
  %v118 = vld [vmem:[%s117] sm:$0xff]
  %s119 = scalar_lea.vmem %s1, 720
  %120 = vst [vmem:[%s119] sm:$0xff] %v118
  %s121 = scalar_lea.vmem %s0, 384
  %v122 = vld [vmem:[%s121] sm:$0xff]
  %s123 = scalar_lea.vmem %s1, 384
  %124 = vst [vmem:[%s123] sm:$0xff] %v122
  %s125 = scalar_lea.vmem %s0, 832
  %v126 = vld [vmem:[%s125] sm:$0xff]
  %s127 = scalar_lea.vmem %s1, 832
  %128 = vst [vmem:[%s127] sm:$0xff] %v126
  %s129 = scalar_lea.vmem %s0, 32
  %v130 = vld [vmem:[%s129] sm:$0xff]
  %s131 = scalar_lea.vmem %s1, 64
  %132 = vst [vmem:[%s131] sm:$0xff] %v130
  %s133 = scalar_lea.vmem %s0, 480
  %v134 = vld [vmem:[%s133] sm:$0xff]
  %s135 = scalar_lea.vmem %s1, 512
  %136 = vst [vmem:[%s135] sm:$0xff] %v134
  %s137 = scalar_lea.vmem %s0, 144
  %v138 = vld [vmem:[%s137] sm:$0xff]
  %s139 = scalar_lea.vmem %s1, 176
  %140 = vst [vmem:[%s139] sm:$0xff] %v138
  %s141 = scalar_lea.vmem %s0, 592
  %v142 = vld [vmem:[%s141] sm:$0xff]
  %s143 = scalar_lea.vmem %s1, 624
  %144 = vst [vmem:[%s143] sm:$0xff] %v142
  %s145 = scalar_lea.vmem %s0, 256
  %v146 = vld [vmem:[%s145] sm:$0xff]
  %s147 = scalar_lea.vmem %s1, 288
  %148 = vst [vmem:[%s147] sm:$0xff] %v146
  %s149 = scalar_lea.vmem %s0, 704
  %v150 = vld [vmem:[%s149] sm:$0xff]
  %s151 = scalar_lea.vmem %s1, 736
  %152 = vst [vmem:[%s151] sm:$0xff] %v150
  %s153 = scalar_lea.vmem %s0, 368
  %v154 = vld [vmem:[%s153] sm:$0xff]
  %s155 = scalar_lea.vmem %s1, 400
  %156 = vst [vmem:[%s155] sm:$0xff] %v154
  %s157 = scalar_lea.vmem %s0, 816
  %v158 = vld [vmem:[%s157] sm:$0xff]
  %s159 = scalar_lea.vmem %s1, 848
  %160 = vst [vmem:[%s159] sm:$0xff] %v158
  %s161 = scalar_lea.vmem %s0, 16
  %v162 = vld [vmem:[%s161] sm:$0xff]
  %s163 = scalar_lea.vmem %s1, 80
  %164 = vst [vmem:[%s163] sm:$0xff] %v162
  %s165 = scalar_lea.vmem %s0, 464
  %v166 = vld [vmem:[%s165] sm:$0xff]
  %s167 = scalar_lea.vmem %s1, 528
  %168 = vst [vmem:[%s167] sm:$0xff] %v166
  %s169 = scalar_lea.vmem %s0, 128
  %v170 = vld [vmem:[%s169] sm:$0xff]
  %s171 = scalar_lea.vmem %s1, 192
  %172 = vst [vmem:[%s171] sm:$0xff] %v170
  %s173 = scalar_lea.vmem %s0, 576
  %v174 = vld [vmem:[%s173] sm:$0xff]
  %s175 = scalar_lea.vmem %s1, 640
  %176 = vst [vmem:[%s175] sm:$0xff] %v174
  %s177 = scalar_lea.vmem %s0, 240
  %v178 = vld [vmem:[%s177] sm:$0xff]
  %s179 = scalar_lea.vmem %s1, 304
  %180 = vst [vmem:[%s179] sm:$0xff] %v178
  %s181 = scalar_lea.vmem %s0, 688
  %v182 = vld [vmem:[%s181] sm:$0xff]
  %s183 = scalar_lea.vmem %s1, 752
  %184 = vst [vmem:[%s183] sm:$0xff] %v182
  %s185 = scalar_lea.vmem %s0, 352
  %v186 = vld [vmem:[%s185] sm:$0xff]
  %s187 = scalar_lea.vmem %s1, 416
  %188 = vst [vmem:[%s187] sm:$0xff] %v186
  %s189 = scalar_lea.vmem %s0, 800
  %v190 = vld [vmem:[%s189] sm:$0xff]
  %s191 = scalar_lea.vmem %s1, 864
  %192 = vst [vmem:[%s191] sm:$0xff] %v190
  %v193 = vld [vmem:[%s0] sm:$0xff]
  %s194 = scalar_lea.vmem %s1, 96
  %195 = vst [vmem:[%s194] sm:$0xff] %v193
  %s196 = scalar_lea.vmem %s0, 448
  %v197 = vld [vmem:[%s196] sm:$0xff]
  %s198 = scalar_lea.vmem %s1, 544
  %199 = vst [vmem:[%s198] sm:$0xff] %v197
  %s200 = scalar_lea.vmem %s0, 112
  %v201 = vld [vmem:[%s200] sm:$0xff]
  %s202 = scalar_lea.vmem %s1, 208
  %203 = vst [vmem:[%s202] sm:$0xff] %v201
  %s204 = scalar_lea.vmem %s0, 560
  %v205 = vld [vmem:[%s204] sm:$0xff]
  %s206 = scalar_lea.vmem %s1, 656
  %207 = vst [vmem:[%s206] sm:$0xff] %v205
  %s208 = scalar_lea.vmem %s0, 224
  %v209 = vld [vmem:[%s208] sm:$0xff]
  %s210 = scalar_lea.vmem %s1, 320
  %211 = vst [vmem:[%s210] sm:$0xff] %v209
  %s212 = scalar_lea.vmem %s0, 672
  %v213 = vld [vmem:[%s212] sm:$0xff]
  %s214 = scalar_lea.vmem %s1, 768
  %215 = vst [vmem:[%s214] sm:$0xff] %v213
  %s216 = scalar_lea.vmem %s0, 336
  %v217 = vld [vmem:[%s216] sm:$0xff]
  %s218 = scalar_lea.vmem %s1, 432
  %219 = vst [vmem:[%s218] sm:$0xff] %v217
  %s220 = scalar_lea.vmem %s0, 784
  %v221 = vld [vmem:[%s220] sm:$0xff]
  %s222 = scalar_lea.vmem %s1, 880
  %223 = vst [vmem:[%s222] sm:$0xff] %v221
  %s224 = scalar_lea.vmem %s0, 104
  %v225 = vld [vmem:[%s224] sm:$0xff]
  %s226 = scalar_lea.vmem %s1, 8
  %227 = vst [vmem:[%s226] sm:$0xff] %v225
  %s228 = scalar_lea.vmem %s0, 552
  %v229 = vld [vmem:[%s228] sm:$0xff]
  %s230 = scalar_lea.vmem %s1, 456
  %231 = vst [vmem:[%s230] sm:$0xff] %v229
  %s232 = scalar_lea.vmem %s0, 216
  %v233 = vld [vmem:[%s232] sm:$0xff]
  %s234 = scalar_lea.vmem %s1, 120
  %235 = vst [vmem:[%s234] sm:$0xff] %v233
  %s236 = scalar_lea.vmem %s0, 664
  %v237 = vld [vmem:[%s236] sm:$0xff]
  %s238 = scalar_lea.vmem %s1, 568
  %239 = vst [vmem:[%s238] sm:$0xff] %v237
  %s240 = scalar_lea.vmem %s0, 328
  %v241 = vld [vmem:[%s240] sm:$0xff]
  %s242 = scalar_lea.vmem %s1, 232
  %243 = vst [vmem:[%s242] sm:$0xff] %v241
  %s244 = scalar_lea.vmem %s0, 776
  %v245 = vld [vmem:[%s244] sm:$0xff]
  %s246 = scalar_lea.vmem %s1, 680
  %247 = vst [vmem:[%s246] sm:$0xff] %v245
  %s248 = scalar_lea.vmem %s0, 440
  %v249 = vld [vmem:[%s248] sm:$0xff]
  %s250 = scalar_lea.vmem %s1, 344
  %251 = vst [vmem:[%s250] sm:$0xff] %v249
  %s252 = scalar_lea.vmem %s0, 888
  %v253 = vld [vmem:[%s252] sm:$0xff]
  %s254 = scalar_lea.vmem %s1, 792
  %255 = vst [vmem:[%s254] sm:$0xff] %v253
  %s256 = scalar_lea.vmem %s0, 88
  %v257 = vld [vmem:[%s256] sm:$0xff]
  %s258 = scalar_lea.vmem %s1, 24
  %259 = vst [vmem:[%s258] sm:$0xff] %v257
  %s260 = scalar_lea.vmem %s0, 536
  %v261 = vld [vmem:[%s260] sm:$0xff]
  %s262 = scalar_lea.vmem %s1, 472
  %263 = vst [vmem:[%s262] sm:$0xff] %v261
  %s264 = scalar_lea.vmem %s0, 200
  %v265 = vld [vmem:[%s264] sm:$0xff]
  %s266 = scalar_lea.vmem %s1, 136
  %267 = vst [vmem:[%s266] sm:$0xff] %v265
  %s268 = scalar_lea.vmem %s0, 648
  %v269 = vld [vmem:[%s268] sm:$0xff]
  %s270 = scalar_lea.vmem %s1, 584
  %271 = vst [vmem:[%s270] sm:$0xff] %v269
  %s272 = scalar_lea.vmem %s0, 312
  %v273 = vld [vmem:[%s272] sm:$0xff]
  %s274 = scalar_lea.vmem %s1, 248
  %275 = vst [vmem:[%s274] sm:$0xff] %v273
  %s276 = scalar_lea.vmem %s0, 760
  %v277 = vld [vmem:[%s276] sm:$0xff]
  %s278 = scalar_lea.vmem %s1, 696
  %279 = vst [vmem:[%s278] sm:$0xff] %v277
  %s280 = scalar_lea.vmem %s0, 424
  %v281 = vld [vmem:[%s280] sm:$0xff]
  %s282 = scalar_lea.vmem %s1, 360
  %283 = vst [vmem:[%s282] sm:$0xff] %v281
  %s284 = scalar_lea.vmem %s0, 872
  %v285 = vld [vmem:[%s284] sm:$0xff]
  %s286 = scalar_lea.vmem %s1, 808
  %287 = vst [vmem:[%s286] sm:$0xff] %v285
  %s288 = scalar_lea.vmem %s0, 72
  %v289 = vld [vmem:[%s288] sm:$0xff]
  %s290 = scalar_lea.vmem %s1, 40
  %291 = vst [vmem:[%s290] sm:$0xff] %v289
  %s292 = scalar_lea.vmem %s0, 520
  %v293 = vld [vmem:[%s292] sm:$0xff]
  %s294 = scalar_lea.vmem %s1, 488
  %295 = vst [vmem:[%s294] sm:$0xff] %v293
  %s296 = scalar_lea.vmem %s0, 184
  %v297 = vld [vmem:[%s296] sm:$0xff]
  %s298 = scalar_lea.vmem %s1, 152
  %299 = vst [vmem:[%s298] sm:$0xff] %v297
  %s300 = scalar_lea.vmem %s0, 632
  %v301 = vld [vmem:[%s300] sm:$0xff]
  %s302 = scalar_lea.vmem %s1, 600
  %303 = vst [vmem:[%s302] sm:$0xff] %v301
  %s304 = scalar_lea.vmem %s0, 296
  %v305 = vld [vmem:[%s304] sm:$0xff]
  %s306 = scalar_lea.vmem %s1, 264
  %307 = vst [vmem:[%s306] sm:$0xff] %v305
  %s308 = scalar_lea.vmem %s0, 744
  %v309 = vld [vmem:[%s308] sm:$0xff]
  %s310 = scalar_lea.vmem %s1, 712
  %311 = vst [vmem:[%s310] sm:$0xff] %v309
  %s312 = scalar_lea.vmem %s0, 408
  %v313 = vld [vmem:[%s312] sm:$0xff]
  %s314 = scalar_lea.vmem %s1, 376
  %315 = vst [vmem:[%s314] sm:$0xff] %v313
  %s316 = scalar_lea.vmem %s0, 856
  %v317 = vld [vmem:[%s316] sm:$0xff]
  %s318 = scalar_lea.vmem %s1, 824
  %319 = vst [vmem:[%s318] sm:$0xff] %v317
  %s320 = scalar_lea.vmem %s0, 56
  %v321 = vld [vmem:[%s320] sm:$0xff]
  %s322 = scalar_lea.vmem %s1, 56
  %323 = vst [vmem:[%s322] sm:$0xff] %v321
  %s324 = scalar_lea.vmem %s0, 504
  %v325 = vld [vmem:[%s324] sm:$0xff]
  %s326 = scalar_lea.vmem %s1, 504
  %327 = vst [vmem:[%s326] sm:$0xff] %v325
  %s328 = scalar_lea.vmem %s0, 168
  %v329 = vld [vmem:[%s328] sm:$0xff]
  %s330 = scalar_lea.vmem %s1, 168
  %331 = vst [vmem:[%s330] sm:$0xff] %v329
  %s332 = scalar_lea.vmem %s0, 616
  %v333 = vld [vmem:[%s332] sm:$0xff]
  %s334 = scalar_lea.vmem %s1, 616
  %335 = vst [vmem:[%s334] sm:$0xff] %v333
  %s336 = scalar_lea.vmem %s0, 280
  %v337 = vld [vmem:[%s336] sm:$0xff]
  %s338 = scalar_lea.vmem %s1, 280
  %339 = vst [vmem:[%s338] sm:$0xff] %v337
  %s340 = scalar_lea.vmem %s0, 728
  %v341 = vld [vmem:[%s340] sm:$0xff]
  %s342 = scalar_lea.vmem %s1, 728
  %343 = vst [vmem:[%s342] sm:$0xff] %v341
  %s344 = scalar_lea.vmem %s0, 392
  %v345 = vld [vmem:[%s344] sm:$0xff]
  %s346 = scalar_lea.vmem %s1, 392
  %347 = vst [vmem:[%s346] sm:$0xff] %v345
  %s348 = scalar_lea.vmem %s0, 840
  %v349 = vld [vmem:[%s348] sm:$0xff]
  %s350 = scalar_lea.vmem %s1, 840
  %351 = vst [vmem:[%s350] sm:$0xff] %v349
  %s352 = scalar_lea.vmem %s0, 40
  %v353 = vld [vmem:[%s352] sm:$0xff]
  %s354 = scalar_lea.vmem %s1, 72
  %355 = vst [vmem:[%s354] sm:$0xff] %v353
  %s356 = scalar_lea.vmem %s0, 488
  %v357 = vld [vmem:[%s356] sm:$0xff]
  %s358 = scalar_lea.vmem %s1, 520
  %359 = vst [vmem:[%s358] sm:$0xff] %v357
  %s360 = scalar_lea.vmem %s0, 152
  %v361 = vld [vmem:[%s360] sm:$0xff]
  %s362 = scalar_lea.vmem %s1, 184
  %363 = vst [vmem:[%s362] sm:$0xff] %v361
  %s364 = scalar_lea.vmem %s0, 600
  %v365 = vld [vmem:[%s364] sm:$0xff]
  %s366 = scalar_lea.vmem %s1, 632
  %367 = vst [vmem:[%s366] sm:$0xff] %v365
  %s368 = scalar_lea.vmem %s0, 264
  %v369 = vld [vmem:[%s368] sm:$0xff]
  %s370 = scalar_lea.vmem %s1, 296
  %371 = vst [vmem:[%s370] sm:$0xff] %v369
  %s372 = scalar_lea.vmem %s0, 712
  %v373 = vld [vmem:[%s372] sm:$0xff]
  %s374 = scalar_lea.vmem %s1, 744
  %375 = vst [vmem:[%s374] sm:$0xff] %v373
  %s376 = scalar_lea.vmem %s0, 376
  %v377 = vld [vmem:[%s376] sm:$0xff]
  %s378 = scalar_lea.vmem %s1, 408
  %379 = vst [vmem:[%s378] sm:$0xff] %v377
  %s380 = scalar_lea.vmem %s0, 824
  %v381 = vld [vmem:[%s380] sm:$0xff]
  %s382 = scalar_lea.vmem %s1, 856
  %383 = vst [vmem:[%s382] sm:$0xff] %v381
  %s384 = scalar_lea.vmem %s0, 24
  %v385 = vld [vmem:[%s384] sm:$0xff]
  %s386 = scalar_lea.vmem %s1, 88
  %387 = vst [vmem:[%s386] sm:$0xff] %v385
  %s388 = scalar_lea.vmem %s0, 472
  %v389 = vld [vmem:[%s388] sm:$0xff]
  %s390 = scalar_lea.vmem %s1, 536
  %391 = vst [vmem:[%s390] sm:$0xff] %v389
  %s392 = scalar_lea.vmem %s0, 136
  %v393 = vld [vmem:[%s392] sm:$0xff]
  %s394 = scalar_lea.vmem %s1, 200
  %395 = vst [vmem:[%s394] sm:$0xff] %v393
  %s396 = scalar_lea.vmem %s0, 584
  %v397 = vld [vmem:[%s396] sm:$0xff]
  %s398 = scalar_lea.vmem %s1, 648
  %399 = vst [vmem:[%s398] sm:$0xff] %v397
  %s400 = scalar_lea.vmem %s0, 248
  %v401 = vld [vmem:[%s400] sm:$0xff]
  %s402 = scalar_lea.vmem %s1, 312
  %403 = vst [vmem:[%s402] sm:$0xff] %v401
  %s404 = scalar_lea.vmem %s0, 696
  %v405 = vld [vmem:[%s404] sm:$0xff]
  %s406 = scalar_lea.vmem %s1, 760
  %407 = vst [vmem:[%s406] sm:$0xff] %v405
  %s408 = scalar_lea.vmem %s0, 360
  %v409 = vld [vmem:[%s408] sm:$0xff]
  %s410 = scalar_lea.vmem %s1, 424
  %411 = vst [vmem:[%s410] sm:$0xff] %v409
  %s412 = scalar_lea.vmem %s0, 808
  %v413 = vld [vmem:[%s412] sm:$0xff]
  %s414 = scalar_lea.vmem %s1, 872
  %415 = vst [vmem:[%s414] sm:$0xff] %v413
  %s416 = scalar_lea.vmem %s0, 8
  %v417 = vld [vmem:[%s416] sm:$0xff]
  %s418 = scalar_lea.vmem %s1, 104
  %419 = vst [vmem:[%s418] sm:$0xff] %v417
  %s420 = scalar_lea.vmem %s0, 456
  %v421 = vld [vmem:[%s420] sm:$0xff]
  %s422 = scalar_lea.vmem %s1, 552
  %423 = vst [vmem:[%s422] sm:$0xff] %v421
  %s424 = scalar_lea.vmem %s0, 120
  %v425 = vld [vmem:[%s424] sm:$0xff]
  %s426 = scalar_lea.vmem %s1, 216
  %427 = vst [vmem:[%s426] sm:$0xff] %v425
  %s428 = scalar_lea.vmem %s0, 568
  %v429 = vld [vmem:[%s428] sm:$0xff]
  %s430 = scalar_lea.vmem %s1, 664
  %431 = vst [vmem:[%s430] sm:$0xff] %v429
  %s432 = scalar_lea.vmem %s0, 232
  %v433 = vld [vmem:[%s432] sm:$0xff]
  %s434 = scalar_lea.vmem %s1, 328
  %435 = vst [vmem:[%s434] sm:$0xff] %v433
  %s436 = scalar_lea.vmem %s0, 680
  %v437 = vld [vmem:[%s436] sm:$0xff]
  %s438 = scalar_lea.vmem %s1, 776
  %439 = vst [vmem:[%s438] sm:$0xff] %v437
  %s440 = scalar_lea.vmem %s0, 344
  %v441 = vld [vmem:[%s440] sm:$0xff]
  %s442 = scalar_lea.vmem %s1, 440
  %443 = vst [vmem:[%s442] sm:$0xff] %v441
  %s444 = scalar_lea.vmem %s0, 792
  %v445 = vld [vmem:[%s444] sm:$0xff]
  %s446 = scalar_lea.vmem %s1, 888
  %447 = vst [vmem:[%s446] sm:$0xff] %v445

</llo_original>
